<compile_context>
chip_gen: v7x
topology: tpu7x:2x2x1
jax: 0.10.0
libtpu: 0.0.40
codegen_flags: <defaults>
</compile_context>

<pallas_src>
import math
import functools

import jax
import jax.numpy as jnp
from jax.experimental import pallas as pl
from jax.experimental.pallas import tpu as pltpu


# ---------------------------------------------------------------------------
# In-kernel helpers (traced inside the Pallas kernel body) — f32 math
# ---------------------------------------------------------------------------
def _layernorm(x, w, b, eps=1e-6):
    mu = jnp.mean(x, axis=-1, keepdims=True)
    xc = x - mu
    var = jnp.mean(xc * xc, axis=-1, keepdims=True)
    inv = jax.lax.rsqrt(var + eps)
    return xc * inv * w + b


def _gelu_tanh(x):
    c = math.sqrt(2.0 / math.pi)
    return 0.5 * x * (1.0 + jnp.tanh(c * (x + 0.044715 * x * x * x)))


# ---------------------------------------------------------------------------
# Pallas kernel: one DiT block, one (batch, query-tile) grid point per call
# ---------------------------------------------------------------------------
def dit_block_kernel(x_ref, ln1w_ref, ln1b_ref,
                     qw_ref, qb_ref, kw_ref, kb_ref, vw_ref, vb_ref,
                     projw_ref, projb_ref, ln2w_ref, ln2b_ref,
                     fc1w_ref, fc1b_ref, fc2w_ref, fc2b_ref,
                     o_ref,
                     k_sc, v_sc, acc_sc,
                     *, num_heads, tq):
    qi = pl.program_id(1)

    # ----- once per batch element: K / V for the full sequence -> VMEM cache -----
    @pl.when(qi == 0)
    def _():
        xf = x_ref[0]                                                   # (N, C) f32
        h1f = _layernorm(xf, ln1w_ref[0], ln1b_ref[0]).astype(jnp.bfloat16)

        def kv_body(h, carry):
            k_sc[h] = (jnp.dot(h1f, kw_ref[h],
                               preferred_element_type=jnp.float32)
                       + kb_ref[h]).astype(jnp.bfloat16)                # (N, Dp)
            v_sc[h] = (jnp.dot(h1f, vw_ref[h],
                               preferred_element_type=jnp.float32)
                       + vb_ref[h]).astype(jnp.bfloat16)                # (N, Dp)
            return carry

        jax.lax.fori_loop(0, num_heads, kv_body, 0)

    # ----- attention branch for this query tile: xq + proj(attn(norm1(xq))) -----
    row0 = pl.multiple_of(qi * tq, tq)
    xq = x_ref[0, pl.ds(row0, tq), :]                                   # (tq, C) f32
    h1q = _layernorm(xq, ln1w_ref[0], ln1b_ref[0]).astype(jnp.bfloat16)

    acc_sc[...] = jnp.zeros_like(acc_sc)                                # (tq, C) f32

    def head_body(h, carry):
        # q weights / bias already carry the 1/sqrt(D) scale (folded offline).
        qs = (jnp.dot(h1q, qw_ref[h], preferred_element_type=jnp.float32)
              + qb_ref[h]).astype(jnp.bfloat16)                         # (tq, Dp)
        # scores: contract padded head_dim of q with head_dim of cached K
        s = jax.lax.dot_general(qs, k_sc[h],
                                (((1,), (1,)), ((), ())),
                                preferred_element_type=jnp.float32)     # (tq, N)
        # stable softmax in f32, reciprocal on the EUP
        s = s - jnp.max(s, axis=-1, keepdims=True)
        p = jnp.exp(s)
        p = p * pl.reciprocal(jnp.sum(p, axis=-1, keepdims=True), approx=True)
        ho = jnp.dot(p.astype(jnp.bfloat16), v_sc[h],
                     preferred_element_type=jnp.float32)                # (tq, Dp)
        # fuse the output projection per head -> no concat of head outputs
        acc_sc[...] += jnp.dot(ho.astype(jnp.bfloat16), projw_ref[h],
                               preferred_element_type=jnp.float32)      # (tq, C)
        return carry

    jax.lax.fori_loop(0, num_heads, head_body, 0)

    x1 = xq + acc_sc[...] + projb_ref[0]

    # ----- MLP branch on this sequence tile: x1 + fc2(gelu(fc1(norm2(x1)))) -----
    h2 = _layernorm(x1, ln2w_ref[0], ln2b_ref[0]).astype(jnp.bfloat16)
    m = jnp.dot(h2, fc1w_ref[...], preferred_element_type=jnp.float32) + fc1b_ref[0]
    m = _gelu_tanh(m)                                                   # (tq, M) f32
    m = jnp.dot(m.astype(jnp.bfloat16), fc2w_ref[...],
                preferred_element_type=jnp.float32) + fc2b_ref[0]

    o_ref[0] = (x1 + m).astype(o_ref.dtype)


# ---------------------------------------------------------------------------
# Wrapper: weight pre-processing + pallas_call
# ---------------------------------------------------------------------------
def _prep_params(params, num_heads):
    """Split / head-major reshape / pad head_dim to 128 / scale / cast, once."""
    C = params["ln1_w"].shape[-1]
    D = C // num_heads
    Dp = ((D + 127) // 128) * 128          # MXU-width head dim (zero padded)
    pad_d = Dp - D
    scale = D ** -0.5

    qkv_w = params["qkv_w"]                # (C, 3C), pre-transposed (in, out)
    qkv_b = params["qkv_b"].reshape(3 * C)
    q_w, k_w, v_w = qkv_w[:, :C], qkv_w[:, C:2 * C], qkv_w[:, 2 * C:]
    q_b, k_b, v_b = qkv_b[:C], qkv_b[C:2 * C], qkv_b[2 * C:]

    def to_hw(w):                          # (C, C) -> (H, C, Dp)
        w = w.reshape(C, num_heads, D).transpose(1, 0, 2)
        return jnp.pad(w, ((0, 0), (0, 0), (0, pad_d)))

    def to_hb(b):                          # (C,) -> (H, 1, Dp)
        b = b.reshape(num_heads, 1, D)
        return jnp.pad(b, ((0, 0), (0, 0), (0, pad_d)))

    proj_w = params["proj_w"].reshape(num_heads, D, C)      # (H, D, C)
    proj_w = jnp.pad(proj_w, ((0, 0), (0, pad_d), (0, 0)))  # (H, Dp, C) zero rows

    p = dict(
        ln1_w=params["ln1_w"].astype(jnp.float32),
        ln1_b=params["ln1_b"].astype(jnp.float32),
        q_w=(to_hw(q_w) * scale).astype(jnp.bfloat16),       # fold 1/sqrt(D)
        q_b=(to_hb(q_b) * scale).astype(jnp.float32),
        k_w=to_hw(k_w).astype(jnp.bfloat16),
        k_b=to_hb(k_b).astype(jnp.float32),
        v_w=to_hw(v_w).astype(jnp.bfloat16),
        v_b=to_hb(v_b).astype(jnp.float32),
        proj_w=proj_w.astype(jnp.bfloat16),
        proj_b=params["proj_b"].astype(jnp.float32),
        ln2_w=params["ln2_w"].astype(jnp.float32),
        ln2_b=params["ln2_b"].astype(jnp.float32),
        fc1_w=params["fc1_w"].astype(jnp.bfloat16),
        fc1_b=params["fc1_b"].astype(jnp.float32),
        fc2_w=params["fc2_w"].astype(jnp.bfloat16),
        fc2_b=params["fc2_b"].astype(jnp.float32),
    )
    return p, Dp


def _pick_q_tile(n, target=128):
    """Largest divisor of n that is <= target (flash-style query tile)."""
    if n <= target:
        return n
    for t in range(target, 0, -1):
        if n % t == 0:
            return t
    return n


def _vmem_capacity_bytes():
    try:
        return int(pltpu.get_tpu_info().vmem_capacity_bytes)
    except Exception:
        return 128 * 1024 * 1024           # conservative fallback (v5e/v6e)


def _vmem_limit_bytes(N, tq, C, Dp, H, M, capacity):
    # bf16 weights (Pallas may double-buffer the constant blocks -> x2 margin)
    w = 2 * 2 * (3 * H * C * Dp + H * Dp * C + C * M + M * C)
    kv = 2 * 2 * H * N * Dp                                  # bf16 K/V scratch
    xio = 2 * 4 * N * C + 2 * 4 * tq * C                     # double-buffered x + out
    act = 4 * (tq * N + 2 * tq * M + 6 * tq * C + 4 * N * C) # f32 in-flight activations
    est = int(1.3 * (w + kv + xio + act)) + (8 << 20)
    cap = int(0.85 * capacity)                               # headroom (critical on v7x)
    return min(max(est, 32 << 20), cap)


def dit_block(x, params, num_heads, *, q_tile=128):
    B, N, C = x.shape
    M = params["fc1_w"].shape[1]
    p, Dp = _prep_params(params, num_heads)
    tq = _pick_q_tile(N, q_tile)
    nq = N // tq

    # Weight / bias blocks never change across the grid -> fetched once
    # (constant index_map; the pipeline elides re-DMA for unchanged blocks).
    def const_spec(shape):
        nd = len(shape)
        return pl.BlockSpec(shape, lambda b, q: (0,) * nd)

    in_specs = [
        pl.BlockSpec((1, N, C), lambda b, q: (b, 0, 0)),                 # x (full seq)
        const_spec((1, C)), const_spec((1, C)),                          # ln1 w, b
        const_spec((num_heads, C, Dp)), const_spec((num_heads, 1, Dp)),  # q w, b
        const_spec((num_heads, C, Dp)), const_spec((num_heads, 1, Dp)),  # k w, b
        const_spec((num_heads, C, Dp)), const_spec((num_heads, 1, Dp)),  # v w, b
        const_spec((num_heads, Dp, C)), const_spec((1, C)),              # proj w, b
        const_spec((1, C)), const_spec((1, C)),                          # ln2 w, b
        const_spec((C, M)), const_spec((1, M)),                          # fc1 w, b
        const_spec((M, C)), const_spec((1, C)),                          # fc2 w, b
    ]

    kernel = functools.partial(dit_block_kernel, num_heads=num_heads, tq=tq)
    vmem_limit = _vmem_limit_bytes(N, tq, C, Dp, num_heads, M,
                                   _vmem_capacity_bytes())

    return pl.pallas_call(
        kernel,
        out_shape=jax.ShapeDtypeStruct((B, N, C), x.dtype),
        grid=(B, nq),
        in_specs=in_specs,
        out_specs=pl.BlockSpec((1, tq, C), lambda b, q: (b, q, 0)),
        scratch_shapes=[
            pltpu.VMEM((num_heads, N, Dp), jnp.bfloat16),   # K cache (per batch elem)
            pltpu.VMEM((num_heads, N, Dp), jnp.bfloat16),   # V cache (per batch elem)
            pltpu.VMEM((tq, C), jnp.float32),               # fused head-proj accumulator
        ],
        compiler_params=pltpu.CompilerParams(
            # batch axis parallel (megacore), q-tile axis sequential so the
            # per-batch K/V scratch cache (init at q==0) stays valid.
            dimension_semantics=("parallel", "arbitrary"),
            vmem_limit_bytes=vmem_limit),
    )(
        x,
        p["ln1_w"], p["ln1_b"],
        p["q_w"], p["q_b"], p["k_w"], p["k_b"], p["v_w"], p["v_b"],
        p["proj_w"], p["proj_b"],
        p["ln2_w"], p["ln2_b"],
        p["fc1_w"], p["fc1_b"], p["fc2_w"], p["fc2_b"],
    )


# ---------------------------------------------------------------------------
# Pure-JAX reference (mirrors PyTorch DiTBlock semantics, full f32)
# ---------------------------------------------------------------------------
def dit_block_ref(x, params, num_heads):
    B, N, C = x.shape
    D = C // num_heads
    scale = D ** -0.5

    def ln(z, w, b):
        mu = jnp.mean(z, axis=-1, keepdims=True)
        var = jnp.mean((z - mu) ** 2, axis=-1, keepdims=True)
        return (z - mu) / jnp.sqrt(var + 1e-6) * w[0] + b[0]

    h1 = ln(x, params["ln1_w"], params["ln1_b"])
    qkv = h1 @ params["qkv_w"] + params["qkv_b"][0]
    q, k, v = jnp.split(qkv, 3, axis=-1)
    q = q.reshape(B, N, num_heads, D).transpose(0, 2, 1, 3)
    k = k.reshape(B, N, num_heads, D).transpose(0, 2, 1, 3)
    v = v.reshape(B, N, num_heads, D).transpose(0, 2, 1, 3)
    s = jnp.einsum("bhnd,bhmd->bhnm", q, k) * scale
    p = jax.nn.softmax(s, axis=-1)
    o = jnp.einsum("bhnm,bhmd->bhnd", p, v).transpose(0, 2, 1, 3).reshape(B, N, C)
    o = o @ params["proj_w"] + params["proj_b"][0]
    x1 = x + o

    h2 = ln(x1, params["ln2_w"], params["ln2_b"])
    m = h2 @ params["fc1_w"] + params["fc1_b"][0]
    m = 0.5 * m * (1.0 + jnp.tanh(math.sqrt(2.0 / math.pi) * (m + 0.044715 * m ** 3)))
    m = m @ params["fc2_w"] + params["fc2_b"][0]
    return x1 + m


# ---------------------------------------------------------------------------
# Main
# ---------------------------------------------------------------------------
if __name__ == "__main__":
    B, N, C = 2, 8, 32          # batch, sequence, hidden_size
    num_heads = 4
    mlp_ratio = 4.0
    H = int(C * mlp_ratio)      # mlp hidden dim = 128

    key = jax.random.PRNGKey(0)
    ks = jax.random.split(key, 8)

    x = jax.random.normal(ks[0], (B, N, C), dtype=jnp.float32)

    params = {
        # LayerNorm affine params (PyTorch default init: weight=1, bias=0;
        # perturbed deterministically to exercise the affine path)
        "ln1_w": jnp.ones((1, C), jnp.float32) + 0.01 * jax.random.normal(ks[1], (1, C)),
        "ln1_b": 0.01 * jax.random.normal(ks[2], (1, C), jnp.float32),
        "ln2_w": jnp.ones((1, C), jnp.float32),
        "ln2_b": jnp.zeros((1, C), jnp.float32),
        # Attention (weights stored pre-transposed: (in, out))
        "qkv_w": 0.02 * jax.random.normal(ks[3], (C, 3 * C), jnp.float32),
        "qkv_b": 0.02 * jax.random.normal(ks[4], (1, 3 * C), jnp.float32),
        "proj_w": 0.02 * jax.random.normal(ks[5], (C, C), jnp.float32),
        "proj_b": jnp.zeros((1, C), jnp.float32),
        # MLP
        "fc1_w": 0.02 * jax.random.normal(ks[6], (C, H), jnp.float32),
        "fc1_b": jnp.zeros((1, H), jnp.float32),
        "fc2_w": 0.02 * jax.random.normal(ks[7], (H, C), jnp.float32),
        "fc2_b": jnp.zeros((1, C), jnp.float32),
    }

    out = dit_block(x, params, num_heads)
    out = jax.block_until_ready(out)

    ref = dit_block_ref(x, params, num_heads)
    assert out.shape == (B, N, C)
    # bf16 MXU operands + approx reciprocal -> loosen tolerance vs. pure-f32 ref
    assert jnp.allclose(out, ref, atol=2e-2, rtol=2e-2), (
        f"max abs err {jnp.max(jnp.abs(out - ref))}")

    print("KERNEL_OK")
</pallas_src>

<mosaic_0001>
module attributes {stable_mosaic.version = 11 : i64} {
  func.func @dit_block_kernel(%arg0: i32, %arg1: i32, %arg2: memref<1x8x32xf32, #tpu.memory_space<vmem>>, %arg3: memref<1x32xf32, #tpu.memory_space<vmem>>, %arg4: memref<1x32xf32, #tpu.memory_space<vmem>>, %arg5: memref<4x32x128xbf16, #tpu.memory_space<vmem>>, %arg6: memref<4x1x128xf32, #tpu.memory_space<vmem>>, %arg7: memref<4x32x128xbf16, #tpu.memory_space<vmem>>, %arg8: memref<4x1x128xf32, #tpu.memory_space<vmem>>, %arg9: memref<4x32x128xbf16, #tpu.memory_space<vmem>>, %arg10: memref<4x1x128xf32, #tpu.memory_space<vmem>>, %arg11: memref<4x128x32xbf16, #tpu.memory_space<vmem>>, %arg12: memref<1x32xf32, #tpu.memory_space<vmem>>, %arg13: memref<1x32xf32, #tpu.memory_space<vmem>>, %arg14: memref<1x32xf32, #tpu.memory_space<vmem>>, %arg15: memref<32x128xbf16, #tpu.memory_space<vmem>>, %arg16: memref<1x128xf32, #tpu.memory_space<vmem>>, %arg17: memref<128x32xbf16, #tpu.memory_space<vmem>>, %arg18: memref<1x32xf32, #tpu.memory_space<vmem>>, %arg19: memref<1x8x32xf32, #tpu.memory_space<vmem>>, %arg20: memref<4x8x128xbf16, #tpu.memory_space<vmem>>, %arg21: memref<4x8x128xbf16, #tpu.memory_space<vmem>>, %arg22: memref<8x32xf32, #tpu.memory_space<vmem>>) attributes {dimension_semantics = [#tpu.dimension_semantics<parallel>, #tpu.dimension_semantics<arbitrary>], iteration_bounds = array<i64: 2, 1>, scalar_prefetch = 0 : i64, scratch_operands = 3 : i64, tpu.core_type = #tpu.core_type<tc>, window_params = [{transform_indices = @transform_0, window_bounds = array<i64: 1, 8, 32>}, {pipeline_mode = #tpu.pipeline_mode<synchronous>, transform_indices = @transform_1, window_bounds = array<i64: 1, 32>}, {pipeline_mode = #tpu.pipeline_mode<synchronous>, transform_indices = @transform_2, window_bounds = array<i64: 1, 32>}, {pipeline_mode = #tpu.pipeline_mode<synchronous>, transform_indices = @transform_3, window_bounds = array<i64: 4, 32, 128>}, {pipeline_mode = #tpu.pipeline_mode<synchronous>, transform_indices = @transform_4, window_bounds = array<i64: 4, 1, 128>}, {pipeline_mode = #tpu.pipeline_mode<synchronous>, transform_indices = @transform_5, window_bounds = array<i64: 4, 32, 128>}, {pipeline_mode = #tpu.pipeline_mode<synchronous>, transform_indices = @transform_6, window_bounds = array<i64: 4, 1, 128>}, {pipeline_mode = #tpu.pipeline_mode<synchronous>, transform_indices = @transform_7, window_bounds = array<i64: 4, 32, 128>}, {pipeline_mode = #tpu.pipeline_mode<synchronous>, transform_indices = @transform_8, window_bounds = array<i64: 4, 1, 128>}, {pipeline_mode = #tpu.pipeline_mode<synchronous>, transform_indices = @transform_9, window_bounds = array<i64: 4, 128, 32>}, {pipeline_mode = #tpu.pipeline_mode<synchronous>, transform_indices = @transform_10, window_bounds = array<i64: 1, 32>}, {pipeline_mode = #tpu.pipeline_mode<synchronous>, transform_indices = @transform_11, window_bounds = array<i64: 1, 32>}, {pipeline_mode = #tpu.pipeline_mode<synchronous>, transform_indices = @transform_12, window_bounds = array<i64: 1, 32>}, {pipeline_mode = #tpu.pipeline_mode<synchronous>, transform_indices = @transform_13, window_bounds = array<i64: 32, 128>}, {pipeline_mode = #tpu.pipeline_mode<synchronous>, transform_indices = @transform_14, window_bounds = array<i64: 1, 128>}, {pipeline_mode = #tpu.pipeline_mode<synchronous>, transform_indices = @transform_15, window_bounds = array<i64: 128, 32>}, {pipeline_mode = #tpu.pipeline_mode<synchronous>, transform_indices = @transform_16, window_bounds = array<i64: 1, 32>}, {transform_indices = @transform_17, window_bounds = array<i64: 1, 8, 32>}]} {
    %c0_i32 = arith.constant 0 : i32
    %0 = arith.cmpi eq, %arg1, %c0_i32 : i32
    %1 = arith.extui %0 : i1 to i32
    %c0_i32_0 = arith.constant 0 : i32
    %2 = arith.cmpi ne, %1, %c0_i32_0 : i32
    scf.if %2 {
      %c0_45 = arith.constant 0 : index
      %c0_46 = arith.constant 0 : index
      %c0_47 = arith.constant 0 : index
      %104 = vector.load %arg2[%c0_45, %c0_46, %c0_47] : memref<1x8x32xf32, #tpu.memory_space<vmem>>, vector<1x8x32xf32>
      %105 = vector.shape_cast %104 : vector<1x8x32xf32> to vector<8x32xf32>
      %c0_48 = arith.constant 0 : index
      %c0_49 = arith.constant 0 : index
      %106 = vector.load %arg3[%c0_48, %c0_49] : memref<1x32xf32, #tpu.memory_space<vmem>>, vector<1x32xf32>
      %107 = vector.shape_cast %106 : vector<1x32xf32> to vector<32xf32>
      %c0_50 = arith.constant 0 : index
      %c0_51 = arith.constant 0 : index
      %108 = vector.load %arg4[%c0_50, %c0_51] : memref<1x32xf32, #tpu.memory_space<vmem>>, vector<1x32xf32>
      %109 = vector.shape_cast %108 : vector<1x32xf32> to vector<32xf32>
      %cst_52 = arith.constant dense<0.000000e+00> : vector<8xf32>
      %110 = vector.multi_reduction <add>, %105, %cst_52 [1] : vector<8x32xf32> to vector<8xf32>
      %111 = vector.shape_cast %110 : vector<8xf32> to vector<8x1xf32>
      %cst_53 = arith.constant 3.200000e+01 : f32
      %112 = vector.broadcast %cst_53 : f32 to vector<8x1xf32>
      %113 = arith.divf %111, %112 : vector<8x1xf32>
      %114 = vector.broadcast %113 : vector<8x1xf32> to vector<8x32xf32>
      %115 = arith.subf %105, %114 : vector<8x32xf32>
      %116 = arith.mulf %115, %115 : vector<8x32xf32>
      %cst_54 = arith.constant dense<0.000000e+00> : vector<8xf32>
      %117 = vector.multi_reduction <add>, %116, %cst_54 [1] : vector<8x32xf32> to vector<8xf32>
      %118 = vector.shape_cast %117 : vector<8xf32> to vector<8x1xf32>
      %cst_55 = arith.constant 3.200000e+01 : f32
      %119 = vector.broadcast %cst_55 : f32 to vector<8x1xf32>
      %120 = arith.divf %118, %119 : vector<8x1xf32>
      %cst_56 = arith.constant 9.99999997E-7 : f32
      %121 = vector.broadcast %cst_56 : f32 to vector<8x1xf32>
      %122 = arith.addf %120, %121 : vector<8x1xf32>
      %123 = math.rsqrt %122 : vector<8x1xf32>
      %124 = vector.broadcast %123 : vector<8x1xf32> to vector<8x32xf32>
      %125 = arith.mulf %115, %124 : vector<8x32xf32>
      %126 = vector.shape_cast %107 : vector<32xf32> to vector<1x32xf32>
      %127 = vector.broadcast %126 : vector<1x32xf32> to vector<8x32xf32>
      %128 = arith.mulf %125, %127 : vector<8x32xf32>
      %129 = vector.shape_cast %109 : vector<32xf32> to vector<1x32xf32>
      %130 = vector.broadcast %129 : vector<1x32xf32> to vector<8x32xf32>
      %131 = arith.addf %128, %130 : vector<8x32xf32>
      %132 = arith.truncf %131 : vector<8x32xf32> to vector<8x32xbf16>
      %c0_i32_57 = arith.constant 0 : i32
      %c4_i32_58 = arith.constant 4 : i32
      %133 = arith.addi %c0_i32_57, %c4_i32_58 : i32
      %c1_i32_59 = arith.constant 1 : i32
      scf.for %arg23 = %c0_i32_57 to %133 step %c1_i32_59  : i32 {
        %134 = arith.index_cast %arg23 : i32 to index
        %c0_61 = arith.constant 0 : index
        %c0_62 = arith.constant 0 : index
        %135 = vector.load %arg7[%134, %c0_61, %c0_62] : memref<4x32x128xbf16, #tpu.memory_space<vmem>>, vector<1x32x128xbf16>
        %136 = vector.shape_cast %135 : vector<1x32x128xbf16> to vector<32x128xbf16>
        %cst_63 = arith.constant dense<0.000000e+00> : vector<8x128xf32>
        %137 = tpu.matmul %132, %136, %cst_63 {dimension_numbers = #tpu.dot_dimension_numbers<[1], [0], [0], [1], [0, 0, 1, 1], [], []>} : vector<8x32xbf16>, vector<32x128xbf16>, vector<8x128xf32> -> vector<8x128xf32>
        %138 = arith.index_cast %arg23 : i32 to index
        %c0_64 = arith.constant 0 : index
        %c0_65 = arith.constant 0 : index
        %139 = vector.load %arg8[%138, %c0_64, %c0_65] : memref<4x1x128xf32, #tpu.memory_space<vmem>>, vector<1x1x128xf32>
        %140 = vector.shape_cast %139 : vector<1x1x128xf32> to vector<1x128xf32>
        %141 = vector.broadcast %140 : vector<1x128xf32> to vector<8x128xf32>
        %142 = arith.addf %137, %141 : vector<8x128xf32>
        %143 = arith.truncf %142 : vector<8x128xf32> to vector<8x128xbf16>
        %144 = arith.index_cast %arg23 : i32 to index
        %c0_66 = arith.constant 0 : index
        %c0_67 = arith.constant 0 : index
        %145 = vector.load %arg20[%144, %c0_66, %c0_67] : memref<4x8x128xbf16, #tpu.memory_space<vmem>>, vector<1x8x128xbf16>
        %146 = vector.shape_cast %145 : vector<1x8x128xbf16> to vector<8x128xbf16>
        %147 = vector.shape_cast %143 : vector<8x128xbf16> to vector<1x8x128xbf16>
        tpu.vector_store %arg20[%144, %c0_66, %c0_67], %147 {strides = array<i32>} : memref<4x8x128xbf16, #tpu.memory_space<vmem>>, vector<1x8x128xbf16>,
        %148 = arith.index_cast %arg23 : i32 to index
        %c0_68 = arith.constant 0 : index
        %c0_69 = arith.constant 0 : index
        %149 = vector.load %arg9[%148, %c0_68, %c0_69] : memref<4x32x128xbf16, #tpu.memory_space<vmem>>, vector<1x32x128xbf16>
        %150 = vector.shape_cast %149 : vector<1x32x128xbf16> to vector<32x128xbf16>
        %cst_70 = arith.constant dense<0.000000e+00> : vector<8x128xf32>
        %151 = tpu.matmul %132, %150, %cst_70 {dimension_numbers = #tpu.dot_dimension_numbers<[1], [0], [0], [1], [0, 0, 1, 1], [], []>} : vector<8x32xbf16>, vector<32x128xbf16>, vector<8x128xf32> -> vector<8x128xf32>
        %152 = arith.index_cast %arg23 : i32 to index
        %c0_71 = arith.constant 0 : index
        %c0_72 = arith.constant 0 : index
        %153 = vector.load %arg10[%152, %c0_71, %c0_72] : memref<4x1x128xf32, #tpu.memory_space<vmem>>, vector<1x1x128xf32>
        %154 = vector.shape_cast %153 : vector<1x1x128xf32> to vector<1x128xf32>
        %155 = vector.broadcast %154 : vector<1x128xf32> to vector<8x128xf32>
        %156 = arith.addf %151, %155 : vector<8x128xf32>
        %157 = arith.truncf %156 : vector<8x128xf32> to vector<8x128xbf16>
        %158 = arith.index_cast %arg23 : i32 to index
        %c0_73 = arith.constant 0 : index
        %c0_74 = arith.constant 0 : index
        %159 = vector.load %arg21[%158, %c0_73, %c0_74] : memref<4x8x128xbf16, #tpu.memory_space<vmem>>, vector<1x8x128xbf16>
        %160 = vector.shape_cast %159 : vector<1x8x128xbf16> to vector<8x128xbf16>
        %161 = vector.shape_cast %157 : vector<8x128xbf16> to vector<1x8x128xbf16>
        tpu.vector_store %arg21[%158, %c0_73, %c0_74], %161 {strides = array<i32>} : memref<4x8x128xbf16, #tpu.memory_space<vmem>>, vector<1x8x128xbf16>,
      }
      %c4_i32_60 = arith.constant 4 : i32
    } else {
    }
    %c8_i32 = arith.constant 8 : i32
    %3 = arith.muli %arg1, %c8_i32 : i32
    %4 = tpu.assume_multiple %3, 8 : i32
    %c0 = arith.constant 0 : index
    %5 = arith.index_cast %4 : i32 to index
    %c0_1 = arith.constant 0 : index
    %6 = vector.load %arg2[%c0, %5, %c0_1] : memref<1x8x32xf32, #tpu.memory_space<vmem>>, vector<1x8x32xf32>
    %7 = vector.shape_cast %6 : vector<1x8x32xf32> to vector<8x32xf32>
    %c0_2 = arith.constant 0 : index
    %c0_3 = arith.constant 0 : index
    %8 = vector.load %arg3[%c0_2, %c0_3] : memref<1x32xf32, #tpu.memory_space<vmem>>, vector<1x32xf32>
    %9 = vector.shape_cast %8 : vector<1x32xf32> to vector<32xf32>
    %c0_4 = arith.constant 0 : index
    %c0_5 = arith.constant 0 : index
    %10 = vector.load %arg4[%c0_4, %c0_5] : memref<1x32xf32, #tpu.memory_space<vmem>>, vector<1x32xf32>
    %11 = vector.shape_cast %10 : vector<1x32xf32> to vector<32xf32>
    %cst = arith.constant dense<0.000000e+00> : vector<8xf32>
    %12 = vector.multi_reduction <add>, %7, %cst [1] : vector<8x32xf32> to vector<8xf32>
    %13 = vector.shape_cast %12 : vector<8xf32> to vector<8x1xf32>
    %cst_6 = arith.constant 3.200000e+01 : f32
    %14 = vector.broadcast %cst_6 : f32 to vector<8x1xf32>
    %15 = arith.divf %13, %14 : vector<8x1xf32>
    %16 = vector.broadcast %15 : vector<8x1xf32> to vector<8x32xf32>
    %17 = arith.subf %7, %16 : vector<8x32xf32>
    %18 = arith.mulf %17, %17 : vector<8x32xf32>
    %cst_7 = arith.constant dense<0.000000e+00> : vector<8xf32>
    %19 = vector.multi_reduction <add>, %18, %cst_7 [1] : vector<8x32xf32> to vector<8xf32>
    %20 = vector.shape_cast %19 : vector<8xf32> to vector<8x1xf32>
    %cst_8 = arith.constant 3.200000e+01 : f32
    %21 = vector.broadcast %cst_8 : f32 to vector<8x1xf32>
    %22 = arith.divf %20, %21 : vector<8x1xf32>
    %cst_9 = arith.constant 9.99999997E-7 : f32
    %23 = vector.broadcast %cst_9 : f32 to vector<8x1xf32>
    %24 = arith.addf %22, %23 : vector<8x1xf32>
    %25 = math.rsqrt %24 : vector<8x1xf32>
    %26 = vector.broadcast %25 : vector<8x1xf32> to vector<8x32xf32>
    %27 = arith.mulf %17, %26 : vector<8x32xf32>
    %28 = vector.shape_cast %9 : vector<32xf32> to vector<1x32xf32>
    %29 = vector.broadcast %28 : vector<1x32xf32> to vector<8x32xf32>
    %30 = arith.mulf %27, %29 : vector<8x32xf32>
    %31 = vector.shape_cast %11 : vector<32xf32> to vector<1x32xf32>
    %32 = vector.broadcast %31 : vector<1x32xf32> to vector<8x32xf32>
    %33 = arith.addf %30, %32 : vector<8x32xf32>
    %34 = arith.truncf %33 : vector<8x32xf32> to vector<8x32xbf16>
    %cst_10 = arith.constant 0.000000e+00 : f32
    %35 = vector.broadcast %cst_10 : f32 to vector<8x32xf32>
    %c0_11 = arith.constant 0 : index
    %c0_12 = arith.constant 0 : index
    %36 = vector.load %arg22[%c0_11, %c0_12] : memref<8x32xf32, #tpu.memory_space<vmem>>, vector<8x32xf32>
    tpu.vector_store %arg22[%c0_11, %c0_12], %35 {strides = array<i32>} : memref<8x32xf32, #tpu.memory_space<vmem>>, vector<8x32xf32>,
    %c0_i32_13 = arith.constant 0 : i32
    %c4_i32 = arith.constant 4 : i32
    %37 = arith.addi %c0_i32_13, %c4_i32 : i32
    %c1_i32 = arith.constant 1 : i32
    scf.for %arg23 = %c0_i32_13 to %37 step %c1_i32  : i32 {
      %104 = arith.index_cast %arg23 : i32 to index
      %c0_45 = arith.constant 0 : index
      %c0_46 = arith.constant 0 : index
      %105 = vector.load %arg5[%104, %c0_45, %c0_46] : memref<4x32x128xbf16, #tpu.memory_space<vmem>>, vector<1x32x128xbf16>
      %106 = vector.shape_cast %105 : vector<1x32x128xbf16> to vector<32x128xbf16>
      %cst_47 = arith.constant dense<0.000000e+00> : vector<8x128xf32>
      %107 = tpu.matmul %34, %106, %cst_47 {dimension_numbers = #tpu.dot_dimension_numbers<[1], [0], [0], [1], [0, 0, 1, 1], [], []>} : vector<8x32xbf16>, vector<32x128xbf16>, vector<8x128xf32> -> vector<8x128xf32>
      %108 = arith.index_cast %arg23 : i32 to index
      %c0_48 = arith.constant 0 : index
      %c0_49 = arith.constant 0 : index
      %109 = vector.load %arg6[%108, %c0_48, %c0_49] : memref<4x1x128xf32, #tpu.memory_space<vmem>>, vector<1x1x128xf32>
      %110 = vector.shape_cast %109 : vector<1x1x128xf32> to vector<1x128xf32>
      %111 = vector.broadcast %110 : vector<1x128xf32> to vector<8x128xf32>
      %112 = arith.addf %107, %111 : vector<8x128xf32>
      %113 = arith.truncf %112 : vector<8x128xf32> to vector<8x128xbf16>
      %114 = arith.index_cast %arg23 : i32 to index
      %c0_50 = arith.constant 0 : index
      %c0_51 = arith.constant 0 : index
      %115 = vector.load %arg20[%114, %c0_50, %c0_51] : memref<4x8x128xbf16, #tpu.memory_space<vmem>>, vector<1x8x128xbf16>
      %116 = vector.shape_cast %115 : vector<1x8x128xbf16> to vector<8x128xbf16>
      %cst_52 = arith.constant dense<0.000000e+00> : vector<8x8xf32>
      %117 = tpu.matmul %113, %116, %cst_52 {dimension_numbers = #tpu.dot_dimension_numbers<[1], [1], [0], [0], [0, 0, 1, 0], [], []>} : vector<8x128xbf16>, vector<8x128xbf16>, vector<8x8xf32> -> vector<8x8xf32>
      %cst_53 = arith.constant dense<0xFF800000> : vector<8xf32>
      %118 = vector.multi_reduction <maximumf>, %117, %cst_53 [1] : vector<8x8xf32> to vector<8xf32>
      %119 = vector.shape_cast %118 : vector<8xf32> to vector<8x1xf32>
      %120 = vector.broadcast %119 : vector<8x1xf32> to vector<8x8xf32>
      %121 = arith.subf %117, %120 : vector<8x8xf32>
      %122 = math.exp %121 : vector<8x8xf32>
      %cst_54 = arith.constant dense<0.000000e+00> : vector<8xf32>
      %123 = vector.multi_reduction <add>, %122, %cst_54 [1] : vector<8x8xf32> to vector<8xf32>
      %124 = vector.shape_cast %123 : vector<8xf32> to vector<8x1xf32>
      %125 = tpu.reciprocal %124 {approx = true} : vector<8x1xf32> -> vector<8x1xf32>
      %126 = vector.broadcast %125 : vector<8x1xf32> to vector<8x8xf32>
      %127 = arith.mulf %122, %126 : vector<8x8xf32>
      %128 = arith.truncf %127 : vector<8x8xf32> to vector<8x8xbf16>
      %129 = arith.index_cast %arg23 : i32 to index
      %c0_55 = arith.constant 0 : index
      %c0_56 = arith.constant 0 : index
      %130 = vector.load %arg21[%129, %c0_55, %c0_56] : memref<4x8x128xbf16, #tpu.memory_space<vmem>>, vector<1x8x128xbf16>
      %131 = vector.shape_cast %130 : vector<1x8x128xbf16> to vector<8x128xbf16>
      %cst_57 = arith.constant dense<0.000000e+00> : vector<8x128xf32>
      %132 = tpu.matmul %128, %131, %cst_57 {dimension_numbers = #tpu.dot_dimension_numbers<[1], [0], [0], [1], [0, 0, 1, 1], [], []>} : vector<8x8xbf16>, vector<8x128xbf16>, vector<8x128xf32> -> vector<8x128xf32>
      %c0_58 = arith.constant 0 : index
      %c0_59 = arith.constant 0 : index
      %133 = vector.load %arg22[%c0_58, %c0_59] : memref<8x32xf32, #tpu.memory_space<vmem>>, vector<8x32xf32>
      %134 = arith.truncf %132 : vector<8x128xf32> to vector<8x128xbf16>
      %135 = arith.index_cast %arg23 : i32 to index
      %c0_60 = arith.constant 0 : index
      %c0_61 = arith.constant 0 : index
      %136 = vector.load %arg11[%135, %c0_60, %c0_61] : memref<4x128x32xbf16, #tpu.memory_space<vmem>>, vector<1x128x32xbf16>
      %137 = vector.shape_cast %136 : vector<1x128x32xbf16> to vector<128x32xbf16>
      %cst_62 = arith.constant dense<0.000000e+00> : vector<8x32xf32>
      %138 = tpu.matmul %134, %137, %cst_62 {dimension_numbers = #tpu.dot_dimension_numbers<[1], [0], [0], [1], [0, 0, 1, 1], [], []>} : vector<8x128xbf16>, vector<128x32xbf16>, vector<8x32xf32> -> vector<8x32xf32>
      %139 = arith.addf %133, %138 : vector<8x32xf32>
      %c0_63 = arith.constant 0 : index
      %c0_64 = arith.constant 0 : index
      %140 = vector.load %arg22[%c0_63, %c0_64] : memref<8x32xf32, #tpu.memory_space<vmem>>, vector<8x32xf32>
      tpu.vector_store %arg22[%c0_63, %c0_64], %139 {strides = array<i32>} : memref<8x32xf32, #tpu.memory_space<vmem>>, vector<8x32xf32>,
    }
    %c4_i32_14 = arith.constant 4 : i32
    %c0_15 = arith.constant 0 : index
    %c0_16 = arith.constant 0 : index
    %38 = vector.load %arg22[%c0_15, %c0_16] : memref<8x32xf32, #tpu.memory_space<vmem>>, vector<8x32xf32>
    %39 = arith.addf %7, %38 : vector<8x32xf32>
    %c0_17 = arith.constant 0 : index
    %c0_18 = arith.constant 0 : index
    %40 = vector.load %arg12[%c0_17, %c0_18] : memref<1x32xf32, #tpu.memory_space<vmem>>, vector<1x32xf32>
    %41 = vector.shape_cast %40 : vector<1x32xf32> to vector<32xf32>
    %42 = vector.shape_cast %41 : vector<32xf32> to vector<1x32xf32>
    %43 = vector.broadcast %42 : vector<1x32xf32> to vector<8x32xf32>
    %44 = arith.addf %39, %43 : vector<8x32xf32>
    %c0_19 = arith.constant 0 : index
    %c0_20 = arith.constant 0 : index
    %45 = vector.load %arg13[%c0_19, %c0_20] : memref<1x32xf32, #tpu.memory_space<vmem>>, vector<1x32xf32>
    %46 = vector.shape_cast %45 : vector<1x32xf32> to vector<32xf32>
    %c0_21 = arith.constant 0 : index
    %c0_22 = arith.constant 0 : index
    %47 = vector.load %arg14[%c0_21, %c0_22] : memref<1x32xf32, #tpu.memory_space<vmem>>, vector<1x32xf32>
    %48 = vector.shape_cast %47 : vector<1x32xf32> to vector<32xf32>
    %cst_23 = arith.constant dense<0.000000e+00> : vector<8xf32>
    %49 = vector.multi_reduction <add>, %44, %cst_23 [1] : vector<8x32xf32> to vector<8xf32>
    %50 = vector.shape_cast %49 : vector<8xf32> to vector<8x1xf32>
    %cst_24 = arith.constant 3.200000e+01 : f32
    %51 = vector.broadcast %cst_24 : f32 to vector<8x1xf32>
    %52 = arith.divf %50, %51 : vector<8x1xf32>
    %53 = vector.broadcast %52 : vector<8x1xf32> to vector<8x32xf32>
    %54 = arith.subf %44, %53 : vector<8x32xf32>
    %55 = arith.mulf %54, %54 : vector<8x32xf32>
    %cst_25 = arith.constant dense<0.000000e+00> : vector<8xf32>
    %56 = vector.multi_reduction <add>, %55, %cst_25 [1] : vector<8x32xf32> to vector<8xf32>
    %57 = vector.shape_cast %56 : vector<8xf32> to vector<8x1xf32>
    %cst_26 = arith.constant 3.200000e+01 : f32
    %58 = vector.broadcast %cst_26 : f32 to vector<8x1xf32>
    %59 = arith.divf %57, %58 : vector<8x1xf32>
    %cst_27 = arith.constant 9.99999997E-7 : f32
    %60 = vector.broadcast %cst_27 : f32 to vector<8x1xf32>
    %61 = arith.addf %59, %60 : vector<8x1xf32>
    %62 = math.rsqrt %61 : vector<8x1xf32>
    %63 = vector.broadcast %62 : vector<8x1xf32> to vector<8x32xf32>
    %64 = arith.mulf %54, %63 : vector<8x32xf32>
    %65 = vector.shape_cast %46 : vector<32xf32> to vector<1x32xf32>
    %66 = vector.broadcast %65 : vector<1x32xf32> to vector<8x32xf32>
    %67 = arith.mulf %64, %66 : vector<8x32xf32>
    %68 = vector.shape_cast %48 : vector<32xf32> to vector<1x32xf32>
    %69 = vector.broadcast %68 : vector<1x32xf32> to vector<8x32xf32>
    %70 = arith.addf %67, %69 : vector<8x32xf32>
    %71 = arith.truncf %70 : vector<8x32xf32> to vector<8x32xbf16>
    %c0_28 = arith.constant 0 : index
    %c0_29 = arith.constant 0 : index
    %72 = vector.load %arg15[%c0_28, %c0_29] : memref<32x128xbf16, #tpu.memory_space<vmem>>, vector<32x128xbf16>
    %cst_30 = arith.constant dense<0.000000e+00> : vector<8x128xf32>
    %73 = tpu.matmul %71, %72, %cst_30 {dimension_numbers = #tpu.dot_dimension_numbers<[1], [0], [0], [1], [0, 0, 1, 1], [], []>} : vector<8x32xbf16>, vector<32x128xbf16>, vector<8x128xf32> -> vector<8x128xf32>
    %c0_31 = arith.constant 0 : index
    %c0_32 = arith.constant 0 : index
    %74 = vector.load %arg16[%c0_31, %c0_32] : memref<1x128xf32, #tpu.memory_space<vmem>>, vector<1x128xf32>
    %75 = vector.shape_cast %74 : vector<1x128xf32> to vector<128xf32>
    %76 = vector.shape_cast %75 : vector<128xf32> to vector<1x128xf32>
    %77 = vector.broadcast %76 : vector<1x128xf32> to vector<8x128xf32>
    %78 = arith.addf %73, %77 : vector<8x128xf32>
    %cst_33 = arith.constant 5.000000e-01 : f32
    %79 = vector.broadcast %cst_33 : f32 to vector<8x128xf32>
    %80 = arith.mulf %79, %78 : vector<8x128xf32>
    %cst_34 = arith.constant 4.471500e-02 : f32
    %81 = vector.broadcast %cst_34 : f32 to vector<8x128xf32>
    %82 = arith.mulf %81, %78 : vector<8x128xf32>
    %83 = arith.mulf %82, %78 : vector<8x128xf32>
    %84 = arith.mulf %83, %78 : vector<8x128xf32>
    %85 = arith.addf %78, %84 : vector<8x128xf32>
    %cst_35 = arith.constant 0.797884583 : f32
    %86 = vector.broadcast %cst_35 : f32 to vector<8x128xf32>
    %87 = arith.mulf %86, %85 : vector<8x128xf32>
    %88 = math.tanh %87 : vector<8x128xf32>
    %cst_36 = arith.constant 1.000000e+00 : f32
    %89 = vector.broadcast %cst_36 : f32 to vector<8x128xf32>
    %90 = arith.addf %89, %88 : vector<8x128xf32>
    %91 = arith.mulf %80, %90 : vector<8x128xf32>
    %92 = arith.truncf %91 : vector<8x128xf32> to vector<8x128xbf16>
    %c0_37 = arith.constant 0 : index
    %c0_38 = arith.constant 0 : index
    %93 = vector.load %arg17[%c0_37, %c0_38] : memref<128x32xbf16, #tpu.memory_space<vmem>>, vector<128x32xbf16>
    %cst_39 = arith.constant dense<0.000000e+00> : vector<8x32xf32>
    %94 = tpu.matmul %92, %93, %cst_39 {dimension_numbers = #tpu.dot_dimension_numbers<[1], [0], [0], [1], [0, 0, 1, 1], [], []>} : vector<8x128xbf16>, vector<128x32xbf16>, vector<8x32xf32> -> vector<8x32xf32>
    %c0_40 = arith.constant 0 : index
    %c0_41 = arith.constant 0 : index
    %95 = vector.load %arg18[%c0_40, %c0_41] : memref<1x32xf32, #tpu.memory_space<vmem>>, vector<1x32xf32>
    %96 = vector.shape_cast %95 : vector<1x32xf32> to vector<32xf32>
    %97 = vector.shape_cast %96 : vector<32xf32> to vector<1x32xf32>
    %98 = vector.broadcast %97 : vector<1x32xf32> to vector<8x32xf32>
    %99 = arith.addf %94, %98 : vector<8x32xf32>
    %100 = arith.addf %44, %99 : vector<8x32xf32>
    %c0_42 = arith.constant 0 : index
    %c0_43 = arith.constant 0 : index
    %c0_44 = arith.constant 0 : index
    %101 = vector.load %arg19[%c0_42, %c0_43, %c0_44] : memref<1x8x32xf32, #tpu.memory_space<vmem>>, vector<1x8x32xf32>
    %102 = vector.shape_cast %101 : vector<1x8x32xf32> to vector<8x32xf32>
    %103 = vector.shape_cast %100 : vector<8x32xf32> to vector<1x8x32xf32>
    tpu.vector_store %arg19[%c0_42, %c0_43, %c0_44], %103 {strides = array<i32>} : memref<1x8x32xf32, #tpu.memory_space<vmem>>, vector<1x8x32xf32>,
    return
  }
  func.func @transform_0(%arg0: i32, %arg1: i32) -> (i32, i32, i32) {
    %c0_i32 = arith.constant 0 : i32
    %c0_i32_0 = arith.constant 0 : i32
    %c0_i32_1 = arith.constant 0 : i32
    return %arg0, %c0_i32, %c0_i32_0 : i32, i32, i32
  }
  func.func @transform_1(%arg0: i32, %arg1: i32) -> (i32, i32) {
    %c0_i32 = arith.constant 0 : i32
    %c0_i32_0 = arith.constant 0 : i32
    %c0_i32_1 = arith.constant 0 : i32
    return %c0_i32, %c0_i32_0 : i32, i32
  }
  func.func @transform_2(%arg0: i32, %arg1: i32) -> (i32, i32) {
    %c0_i32 = arith.constant 0 : i32
    %c0_i32_0 = arith.constant 0 : i32
    %c0_i32_1 = arith.constant 0 : i32
    return %c0_i32, %c0_i32_0 : i32, i32
  }
  func.func @transform_3(%arg0: i32, %arg1: i32) -> (i32, i32, i32) {
    %c0_i32 = arith.constant 0 : i32
    %c0_i32_0 = arith.constant 0 : i32
    %c0_i32_1 = arith.constant 0 : i32
    %c0_i32_2 = arith.constant 0 : i32
    return %c0_i32, %c0_i32_0, %c0_i32_1 : i32, i32, i32
  }
  func.func @transform_4(%arg0: i32, %arg1: i32) -> (i32, i32, i32) {
    %c0_i32 = arith.constant 0 : i32
    %c0_i32_0 = arith.constant 0 : i32
    %c0_i32_1 = arith.constant 0 : i32
    %c0_i32_2 = arith.constant 0 : i32
    return %c0_i32, %c0_i32_0, %c0_i32_1 : i32, i32, i32
  }
  func.func @transform_5(%arg0: i32, %arg1: i32) -> (i32, i32, i32) {
    %c0_i32 = arith.constant 0 : i32
    %c0_i32_0 = arith.constant 0 : i32
    %c0_i32_1 = arith.constant 0 : i32
    %c0_i32_2 = arith.constant 0 : i32
    return %c0_i32, %c0_i32_0, %c0_i32_1 : i32, i32, i32
  }
  func.func @transform_6(%arg0: i32, %arg1: i32) -> (i32, i32, i32) {
    %c0_i32 = arith.constant 0 : i32
    %c0_i32_0 = arith.constant 0 : i32
    %c0_i32_1 = arith.constant 0 : i32
    %c0_i32_2 = arith.constant 0 : i32
    return %c0_i32, %c0_i32_0, %c0_i32_1 : i32, i32, i32
  }
  func.func @transform_7(%arg0: i32, %arg1: i32) -> (i32, i32, i32) {
    %c0_i32 = arith.constant 0 : i32
    %c0_i32_0 = arith.constant 0 : i32
    %c0_i32_1 = arith.constant 0 : i32
    %c0_i32_2 = arith.constant 0 : i32
    return %c0_i32, %c0_i32_0, %c0_i32_1 : i32, i32, i32
  }
  func.func @transform_8(%arg0: i32, %arg1: i32) -> (i32, i32, i32) {
    %c0_i32 = arith.constant 0 : i32
    %c0_i32_0 = arith.constant 0 : i32
    %c0_i32_1 = arith.constant 0 : i32
    %c0_i32_2 = arith.constant 0 : i32
    return %c0_i32, %c0_i32_0, %c0_i32_1 : i32, i32, i32
  }
  func.func @transform_9(%arg0: i32, %arg1: i32) -> (i32, i32, i32) {
    %c0_i32 = arith.constant 0 : i32
    %c0_i32_0 = arith.constant 0 : i32
    %c0_i32_1 = arith.constant 0 : i32
    %c0_i32_2 = arith.constant 0 : i32
    return %c0_i32, %c0_i32_0, %c0_i32_1 : i32, i32, i32
  }
  func.func @transform_10(%arg0: i32, %arg1: i32) -> (i32, i32) {
    %c0_i32 = arith.constant 0 : i32
    %c0_i32_0 = arith.constant 0 : i32
    %c0_i32_1 = arith.constant 0 : i32
    return %c0_i32, %c0_i32_0 : i32, i32
  }
  func.func @transform_11(%arg0: i32, %arg1: i32) -> (i32, i32) {
    %c0_i32 = arith.constant 0 : i32
    %c0_i32_0 = arith.constant 0 : i32
    %c0_i32_1 = arith.constant 0 : i32
    return %c0_i32, %c0_i32_0 : i32, i32
  }
  func.func @transform_12(%arg0: i32, %arg1: i32) -> (i32, i32) {
    %c0_i32 = arith.constant 0 : i32
    %c0_i32_0 = arith.constant 0 : i32
    %c0_i32_1 = arith.constant 0 : i32
    return %c0_i32, %c0_i32_0 : i32, i32
  }
  func.func @transform_13(%arg0: i32, %arg1: i32) -> (i32, i32) {
    %c0_i32 = arith.constant 0 : i32
    %c0_i32_0 = arith.constant 0 : i32
    %c0_i32_1 = arith.constant 0 : i32
    return %c0_i32, %c0_i32_0 : i32, i32
  }
  func.func @transform_14(%arg0: i32, %arg1: i32) -> (i32, i32) {
    %c0_i32 = arith.constant 0 : i32
    %c0_i32_0 = arith.constant 0 : i32
    %c0_i32_1 = arith.constant 0 : i32
    return %c0_i32, %c0_i32_0 : i32, i32
  }
  func.func @transform_15(%arg0: i32, %arg1: i32) -> (i32, i32) {
    %c0_i32 = arith.constant 0 : i32
    %c0_i32_0 = arith.constant 0 : i32
    %c0_i32_1 = arith.constant 0 : i32
    return %c0_i32, %c0_i32_0 : i32, i32
  }
  func.func @transform_16(%arg0: i32, %arg1: i32) -> (i32, i32) {
    %c0_i32 = arith.constant 0 : i32
    %c0_i32_0 = arith.constant 0 : i32
    %c0_i32_1 = arith.constant 0 : i32
    return %c0_i32, %c0_i32_0 : i32, i32
  }
  func.func @transform_17(%arg0: i32, %arg1: i32) -> (i32, i32, i32) {
    %c0_i32 = arith.constant 0 : i32
    %c0_i32_0 = arith.constant 0 : i32
    return %arg0, %arg1, %c0_i32 : i32, i32, i32
  }
}

</mosaic_0001>

<llo_original>
// kernel: tpu_custom_call.1
$region0: #{tpu_custom_call.1}
  #allocation0 [shape = 'u32[]', space=smem, size = 0x4, offset = 0x4, fixed_abs, tag = 'smem constant byte address 0x4 - core index']
  #allocation1 [shape = 'u32[144,128]{1,0:T(1,128)}', space=vmem, size = 0x12000, scoped, tag = 'internal scratch']
  #allocation2 [shape = 'bf16[4,8,128]{2,1,0:T(8,128)(2,1)}', space=vmem, size = 0x2000, scoped, tag = 'scratch operand']
  #allocation3 [shape = 'bf16[4,8,128]{2,1,0:T(8,128)(2,1)}', space=vmem, size = 0x2000, scoped, tag = 'scratch operand']
  #allocation4 [shape = 'f32[8,32]{1,0:T(8,128)}', space=vmem, size = 0x1000, scoped, tag = 'scratch operand']
  %s0 = inlined_call_operand.vmem [shape: f32[2,8,32], index: 0, kind: input, shape index: {}]
  %s1 = inlined_call_operand.vmem [shape: f32[1,32], index: 1, kind: input, shape index: {}]
  %s2 = inlined_call_operand.vmem [shape: f32[1,32], index: 2, kind: input, shape index: {}]
  %s3 = inlined_call_operand.vmem [shape: bf16[4,32,128], index: 3, kind: input, shape index: {}]
  %s4 = inlined_call_operand.vmem [shape: f32[4,1,128], index: 4, kind: input, shape index: {}]
  %s5 = inlined_call_operand.vmem [shape: bf16[4,32,128], index: 5, kind: input, shape index: {}]
  %s6 = inlined_call_operand.vmem [shape: f32[4,1,128], index: 6, kind: input, shape index: {}]
  %s7 = inlined_call_operand.vmem [shape: bf16[4,32,128], index: 7, kind: input, shape index: {}]
  %s8 = inlined_call_operand.vmem [shape: f32[4,1,128], index: 8, kind: input, shape index: {}]
  %s9 = inlined_call_operand.vmem [shape: bf16[4,128,32], index: 9, kind: input, shape index: {}]
  %s10 = inlined_call_operand.vmem [shape: f32[1,32], index: 10, kind: input, shape index: {}]
  %s11 = inlined_call_operand.vmem [shape: f32[1,32], index: 11, kind: input, shape index: {}]
  %s12 = inlined_call_operand.vmem [shape: f32[1,32], index: 12, kind: input, shape index: {}]
  %s13 = inlined_call_operand.vmem [shape: bf16[32,128], index: 13, kind: input, shape index: {}]
  %s14 = inlined_call_operand.vmem [shape: f32[1,128], index: 14, kind: input, shape index: {}]
  %s15 = inlined_call_operand.vmem [shape: bf16[128,32], index: 15, kind: input, shape index: {}]
  %s16 = inlined_call_operand.vmem [shape: f32[1,32], index: 16, kind: input, shape index: {}]
  %s17 = inlined_call_operand.hbm [shape: f32[2,8,32], index: 17, kind: output, shape index: {}]
  %s18 = sld [smem:[#allocation0]]
  $region119: #{tpu_custom_call.1} parent=0
    _
  %s20 = ssub.s32 1, %s18
  %s21 = scalar_select 0, %s20, %s18
  $region1: #{tpu_custom_call.1} parent=0
    #allocation5 [shape = 'u8[8192]{0}', space=vmem, size = 0x2000, scoped, tag = 'output window, operand 0']
    #allocation6 [shape = 's32[2]{0}', space=sflag, size = 0x8, scoped, tag = 'scoped memory for tpu_custom_call.1']
    %22 = vsyncpa [#allocation6], 0
    %s23 = scalar_lea.sflag [#allocation6], 1
    %24 = vsyncpa %s23, 0
    loop: start=0, step=1, limit=4
    $region2: #{tpu_custom_call.1} parent=1 // loop_pre_header
      _
    $region3: #{tpu_custom_call.1} parent=1 // loop_header
      %s26 = sphi 0, %s30
      %p27 = scmp.ge.s32.totalorder %s26, 4
      %s33 = sphi 0, %s45
      %s34 = sphi 0, %s41
      %s35 = sphi 0, %s33
      %s36 = sphi 0, %s34
      %s37 = sphi 0, %s35
      %s38 = sphi 0, %s36
      %s48 = sphi 0, %s50
      %s51 = sphi 0, %s48
      %s52 = sphi 0, %s51
      %s68 = sphi 0, %s52
      %s72 = sphi 0, %s72
      %s74 = sphi 0, %s72
      %s75 = sphi 0, %s74
      %s89 = sphi 0, %s75
      %s93 = sphi 0, %s93
      %s95 = sphi 0, %s93
      %s96 = sphi 0, %s95
      %s110 = sphi 0, %s96
      %s114 = sphi 0, %s114
      %s116 = sphi 0, %s114
      %s117 = sphi 0, %s116
      %s131 = sphi 0, %s117
      %s135 = sphi 0, %s135
      %s137 = sphi 0, %s135
      %s138 = sphi 0, %s137
      %s152 = sphi 0, %s138
      %s156 = sphi 0, %s156
      %s158 = sphi 0, %s156
      %s159 = sphi 0, %s158
      %s173 = sphi 0, %s159
      %s177 = sphi 0, %s177
      %s179 = sphi 0, %s177
      %s180 = sphi 0, %s179
      %s194 = sphi 0, %s180
      %s198 = sphi 0, %s198
      %s200 = sphi 0, %s198
      %s201 = sphi 0, %s200
      %s215 = sphi 0, %s201
      %s219 = sphi 0, %s219
      %s221 = sphi 0, %s219
      %s222 = sphi 0, %s221
      %s236 = sphi 0, %s222
      %s240 = sphi 0, %s240
      %s242 = sphi 0, %s240
      %s243 = sphi 0, %s242
      %s257 = sphi 0, %s243
      %s261 = sphi 0, %s261
      %s263 = sphi 0, %s261
      %s264 = sphi 0, %s263
      %s278 = sphi 0, %s264
      %s282 = sphi 0, %s282
      %s284 = sphi 0, %s282
      %s285 = sphi 0, %s284
      %s299 = sphi 0, %s285
      %s303 = sphi 0, %s303
      %s305 = sphi 0, %s303
      %s306 = sphi 0, %s305
      %s320 = sphi 0, %s306
      %s324 = sphi 0, %s324
      %s326 = sphi 0, %s324
      %s327 = sphi 0, %s326
      %s341 = sphi 0, %s327
      %s345 = sphi 0, %s345
      %s347 = sphi 0, %s345
      %s348 = sphi 0, %s347
      %s362 = sphi 0, %s348
      %s366 = sphi 0, %s366
      %s368 = sphi 0, %s366
      %s369 = sphi 0, %s368
      %s383 = sphi 0, %s369
      %s387 = sphi 0, %s387
      %s389 = sphi 0, %s387
      %s390 = sphi 0, %s389
      %s404 = sphi 0, %s390
      %s412 = sphi 0, %s414
      %s415 = sphi 0, %s412
      %s416 = sphi 0, %s415
      %s432 = sphi 0, %s416
    $region4: #{tpu_custom_call.1} parent=1 // loop_header_branch
      %29 = sbr.rel (%p27) target = $region8
    $region5: #{tpu_custom_call.1} parent=1 // loop_body
      %s31 = ssub.s32 %s26, 1
      %s32 = ssub.s32 %s26, 2
      %s39 = sadd.s32 1, %s34
      %p40 = scmp.ge.s32.totalorder %s39, 1
      %s41 = scalar_select %p40, 0, %s39
      %s42 = sadd.s32 1, %s33
      %s43 = scalar_select %p40, %s42, %s33
      %p44 = scmp.ge.s32.totalorder %s43, 2
      %s45 = scalar_select %p44, 0, %s43
      %s46 = ssub.s32 %s33, %s45
      %p47 = scmp.eq.s32.totalorder %s46, 0
      %s49 = sadd.s32 %s48, 1
      %s50 = scalar_select %p47, %s48, %s49
      %p53 = pneg %p47
      %p54 = scmp.eq.s32.totalorder %s26, 1
      %p55 = por %p53, %p54
      %p56 = scmp.ne.s32.totalorder %s48, %s51
      %p57 = scmp.eq.s32.totalorder %s26, 0
      %p58 = por %p56, %p57
      %p59 = scmp.ne.s32.totalorder %s48, %s51
      %p60 = scmp.eq.s32.totalorder %s31, 1
      %p61 = por %p59, %p60
      %p62 = scmp.ne.s32.totalorder %s51, %s52
      %p63 = scmp.eq.s32.totalorder %s31, 0
      %p64 = por %p62, %p63
      %p65 = scmp.ne.s32.totalorder %s51, %s52
      %p66 = scmp.eq.s32.totalorder %s32, 1
      %p67 = por %p65, %p66
      %p69 = scmp.ne.s32.totalorder %s52, %s68
      %p70 = scmp.eq.s32.totalorder %s32, 0
      %p71 = por %p69, %p70
      %s73 = sadd.s32 %s72, 1
      %p76 = scmp.eq.s32.totalorder %s26, 1
      %p77 = scmp.ne.s32.totalorder %s72, %s74
      %p78 = scmp.eq.s32.totalorder %s26, 0
      %p79 = por %p77, %p78
      %p80 = scmp.ne.s32.totalorder %s72, %s74
      %p81 = scmp.eq.s32.totalorder %s31, 1
      %p82 = por %p80, %p81
      %p83 = scmp.ne.s32.totalorder %s74, %s75
      %p84 = scmp.eq.s32.totalorder %s31, 0
      %p85 = por %p83, %p84
      %p86 = scmp.ne.s32.totalorder %s74, %s75
      %p87 = scmp.eq.s32.totalorder %s32, 1
      %p88 = por %p86, %p87
      %p90 = scmp.ne.s32.totalorder %s75, %s89
      %p91 = scmp.eq.s32.totalorder %s32, 0
      %p92 = por %p90, %p91
      %s94 = sadd.s32 %s93, 1
      %p97 = scmp.eq.s32.totalorder %s26, 1
      %p98 = scmp.ne.s32.totalorder %s93, %s95
      %p99 = scmp.eq.s32.totalorder %s26, 0
      %p100 = por %p98, %p99
      %p101 = scmp.ne.s32.totalorder %s93, %s95
      %p102 = scmp.eq.s32.totalorder %s31, 1
      %p103 = por %p101, %p102
      %p104 = scmp.ne.s32.totalorder %s95, %s96
      %p105 = scmp.eq.s32.totalorder %s31, 0
      %p106 = por %p104, %p105
      %p107 = scmp.ne.s32.totalorder %s95, %s96
      %p108 = scmp.eq.s32.totalorder %s32, 1
      %p109 = por %p107, %p108
      %p111 = scmp.ne.s32.totalorder %s96, %s110
      %p112 = scmp.eq.s32.totalorder %s32, 0
      %p113 = por %p111, %p112
      %s115 = sadd.s32 %s114, 1
      %p118 = scmp.eq.s32.totalorder %s26, 1
      %p119 = scmp.ne.s32.totalorder %s114, %s116
      %p120 = scmp.eq.s32.totalorder %s26, 0
      %p121 = por %p119, %p120
      %p122 = scmp.ne.s32.totalorder %s114, %s116
      %p123 = scmp.eq.s32.totalorder %s31, 1
      %p124 = por %p122, %p123
      %p125 = scmp.ne.s32.totalorder %s116, %s117
      %p126 = scmp.eq.s32.totalorder %s31, 0
      %p127 = por %p125, %p126
      %p128 = scmp.ne.s32.totalorder %s116, %s117
      %p129 = scmp.eq.s32.totalorder %s32, 1
      %p130 = por %p128, %p129
      %p132 = scmp.ne.s32.totalorder %s117, %s131
      %p133 = scmp.eq.s32.totalorder %s32, 0
      %p134 = por %p132, %p133
      %s136 = sadd.s32 %s135, 1
      %p139 = scmp.eq.s32.totalorder %s26, 1
      %p140 = scmp.ne.s32.totalorder %s135, %s137
      %p141 = scmp.eq.s32.totalorder %s26, 0
      %p142 = por %p140, %p141
      %p143 = scmp.ne.s32.totalorder %s135, %s137
      %p144 = scmp.eq.s32.totalorder %s31, 1
      %p145 = por %p143, %p144
      %p146 = scmp.ne.s32.totalorder %s137, %s138
      %p147 = scmp.eq.s32.totalorder %s31, 0
      %p148 = por %p146, %p147
      %p149 = scmp.ne.s32.totalorder %s137, %s138
      %p150 = scmp.eq.s32.totalorder %s32, 1
      %p151 = por %p149, %p150
      %p153 = scmp.ne.s32.totalorder %s138, %s152
      %p154 = scmp.eq.s32.totalorder %s32, 0
      %p155 = por %p153, %p154
      %s157 = sadd.s32 %s156, 1
      %p160 = scmp.eq.s32.totalorder %s26, 1
      %p161 = scmp.ne.s32.totalorder %s156, %s158
      %p162 = scmp.eq.s32.totalorder %s26, 0
      %p163 = por %p161, %p162
      %p164 = scmp.ne.s32.totalorder %s156, %s158
      %p165 = scmp.eq.s32.totalorder %s31, 1
      %p166 = por %p164, %p165
      %p167 = scmp.ne.s32.totalorder %s158, %s159
      %p168 = scmp.eq.s32.totalorder %s31, 0
      %p169 = por %p167, %p168
      %p170 = scmp.ne.s32.totalorder %s158, %s159
      %p171 = scmp.eq.s32.totalorder %s32, 1
      %p172 = por %p170, %p171
      %p174 = scmp.ne.s32.totalorder %s159, %s173
      %p175 = scmp.eq.s32.totalorder %s32, 0
      %p176 = por %p174, %p175
      %s178 = sadd.s32 %s177, 1
      %p181 = scmp.eq.s32.totalorder %s26, 1
      %p182 = scmp.ne.s32.totalorder %s177, %s179
      %p183 = scmp.eq.s32.totalorder %s26, 0
      %p184 = por %p182, %p183
      %p185 = scmp.ne.s32.totalorder %s177, %s179
      %p186 = scmp.eq.s32.totalorder %s31, 1
      %p187 = por %p185, %p186
      %p188 = scmp.ne.s32.totalorder %s179, %s180
      %p189 = scmp.eq.s32.totalorder %s31, 0
      %p190 = por %p188, %p189
      %p191 = scmp.ne.s32.totalorder %s179, %s180
      %p192 = scmp.eq.s32.totalorder %s32, 1
      %p193 = por %p191, %p192
      %p195 = scmp.ne.s32.totalorder %s180, %s194
      %p196 = scmp.eq.s32.totalorder %s32, 0
      %p197 = por %p195, %p196
      %s199 = sadd.s32 %s198, 1
      %p202 = scmp.eq.s32.totalorder %s26, 1
      %p203 = scmp.ne.s32.totalorder %s198, %s200
      %p204 = scmp.eq.s32.totalorder %s26, 0
      %p205 = por %p203, %p204
      %p206 = scmp.ne.s32.totalorder %s198, %s200
      %p207 = scmp.eq.s32.totalorder %s31, 1
      %p208 = por %p206, %p207
      %p209 = scmp.ne.s32.totalorder %s200, %s201
      %p210 = scmp.eq.s32.totalorder %s31, 0
      %p211 = por %p209, %p210
      %p212 = scmp.ne.s32.totalorder %s200, %s201
      %p213 = scmp.eq.s32.totalorder %s32, 1
      %p214 = por %p212, %p213
      %p216 = scmp.ne.s32.totalorder %s201, %s215
      %p217 = scmp.eq.s32.totalorder %s32, 0
      %p218 = por %p216, %p217
      %s220 = sadd.s32 %s219, 1
      %p223 = scmp.eq.s32.totalorder %s26, 1
      %p224 = scmp.ne.s32.totalorder %s219, %s221
      %p225 = scmp.eq.s32.totalorder %s26, 0
      %p226 = por %p224, %p225
      %p227 = scmp.ne.s32.totalorder %s219, %s221
      %p228 = scmp.eq.s32.totalorder %s31, 1
      %p229 = por %p227, %p228
      %p230 = scmp.ne.s32.totalorder %s221, %s222
      %p231 = scmp.eq.s32.totalorder %s31, 0
      %p232 = por %p230, %p231
      %p233 = scmp.ne.s32.totalorder %s221, %s222
      %p234 = scmp.eq.s32.totalorder %s32, 1
      %p235 = por %p233, %p234
      %p237 = scmp.ne.s32.totalorder %s222, %s236
      %p238 = scmp.eq.s32.totalorder %s32, 0
      %p239 = por %p237, %p238
      %s241 = sadd.s32 %s240, 1
      %p244 = scmp.eq.s32.totalorder %s26, 1
      %p245 = scmp.ne.s32.totalorder %s240, %s242
      %p246 = scmp.eq.s32.totalorder %s26, 0
      %p247 = por %p245, %p246
      %p248 = scmp.ne.s32.totalorder %s240, %s242
      %p249 = scmp.eq.s32.totalorder %s31, 1
      %p250 = por %p248, %p249
      %p251 = scmp.ne.s32.totalorder %s242, %s243
      %p252 = scmp.eq.s32.totalorder %s31, 0
      %p253 = por %p251, %p252
      %p254 = scmp.ne.s32.totalorder %s242, %s243
      %p255 = scmp.eq.s32.totalorder %s32, 1
      %p256 = por %p254, %p255
      %p258 = scmp.ne.s32.totalorder %s243, %s257
      %p259 = scmp.eq.s32.totalorder %s32, 0
      %p260 = por %p258, %p259
      %s262 = sadd.s32 %s261, 1
      %p265 = scmp.eq.s32.totalorder %s26, 1
      %p266 = scmp.ne.s32.totalorder %s261, %s263
      %p267 = scmp.eq.s32.totalorder %s26, 0
      %p268 = por %p266, %p267
      %p269 = scmp.ne.s32.totalorder %s261, %s263
      %p270 = scmp.eq.s32.totalorder %s31, 1
      %p271 = por %p269, %p270
      %p272 = scmp.ne.s32.totalorder %s263, %s264
      %p273 = scmp.eq.s32.totalorder %s31, 0
      %p274 = por %p272, %p273
      %p275 = scmp.ne.s32.totalorder %s263, %s264
      %p276 = scmp.eq.s32.totalorder %s32, 1
      %p277 = por %p275, %p276
      %p279 = scmp.ne.s32.totalorder %s264, %s278
      %p280 = scmp.eq.s32.totalorder %s32, 0
      %p281 = por %p279, %p280
      %s283 = sadd.s32 %s282, 1
      %p286 = scmp.eq.s32.totalorder %s26, 1
      %p287 = scmp.ne.s32.totalorder %s282, %s284
      %p288 = scmp.eq.s32.totalorder %s26, 0
      %p289 = por %p287, %p288
      %p290 = scmp.ne.s32.totalorder %s282, %s284
      %p291 = scmp.eq.s32.totalorder %s31, 1
      %p292 = por %p290, %p291
      %p293 = scmp.ne.s32.totalorder %s284, %s285
      %p294 = scmp.eq.s32.totalorder %s31, 0
      %p295 = por %p293, %p294
      %p296 = scmp.ne.s32.totalorder %s284, %s285
      %p297 = scmp.eq.s32.totalorder %s32, 1
      %p298 = por %p296, %p297
      %p300 = scmp.ne.s32.totalorder %s285, %s299
      %p301 = scmp.eq.s32.totalorder %s32, 0
      %p302 = por %p300, %p301
      %s304 = sadd.s32 %s303, 1
      %p307 = scmp.eq.s32.totalorder %s26, 1
      %p308 = scmp.ne.s32.totalorder %s303, %s305
      %p309 = scmp.eq.s32.totalorder %s26, 0
      %p310 = por %p308, %p309
      %p311 = scmp.ne.s32.totalorder %s303, %s305
      %p312 = scmp.eq.s32.totalorder %s31, 1
      %p313 = por %p311, %p312
      %p314 = scmp.ne.s32.totalorder %s305, %s306
      %p315 = scmp.eq.s32.totalorder %s31, 0
      %p316 = por %p314, %p315
      %p317 = scmp.ne.s32.totalorder %s305, %s306
      %p318 = scmp.eq.s32.totalorder %s32, 1
      %p319 = por %p317, %p318
      %p321 = scmp.ne.s32.totalorder %s306, %s320
      %p322 = scmp.eq.s32.totalorder %s32, 0
      %p323 = por %p321, %p322
      %s325 = sadd.s32 %s324, 1
      %p328 = scmp.eq.s32.totalorder %s26, 1
      %p329 = scmp.ne.s32.totalorder %s324, %s326
      %p330 = scmp.eq.s32.totalorder %s26, 0
      %p331 = por %p329, %p330
      %p332 = scmp.ne.s32.totalorder %s324, %s326
      %p333 = scmp.eq.s32.totalorder %s31, 1
      %p334 = por %p332, %p333
      %p335 = scmp.ne.s32.totalorder %s326, %s327
      %p336 = scmp.eq.s32.totalorder %s31, 0
      %p337 = por %p335, %p336
      %p338 = scmp.ne.s32.totalorder %s326, %s327
      %p339 = scmp.eq.s32.totalorder %s32, 1
      %p340 = por %p338, %p339
      %p342 = scmp.ne.s32.totalorder %s327, %s341
      %p343 = scmp.eq.s32.totalorder %s32, 0
      %p344 = por %p342, %p343
      %s346 = sadd.s32 %s345, 1
      %p349 = scmp.eq.s32.totalorder %s26, 1
      %p350 = scmp.ne.s32.totalorder %s345, %s347
      %p351 = scmp.eq.s32.totalorder %s26, 0
      %p352 = por %p350, %p351
      %p353 = scmp.ne.s32.totalorder %s345, %s347
      %p354 = scmp.eq.s32.totalorder %s31, 1
      %p355 = por %p353, %p354
      %p356 = scmp.ne.s32.totalorder %s347, %s348
      %p357 = scmp.eq.s32.totalorder %s31, 0
      %p358 = por %p356, %p357
      %p359 = scmp.ne.s32.totalorder %s347, %s348
      %p360 = scmp.eq.s32.totalorder %s32, 1
      %p361 = por %p359, %p360
      %p363 = scmp.ne.s32.totalorder %s348, %s362
      %p364 = scmp.eq.s32.totalorder %s32, 0
      %p365 = por %p363, %p364
      %s367 = sadd.s32 %s366, 1
      %p370 = scmp.eq.s32.totalorder %s26, 1
      %p371 = scmp.ne.s32.totalorder %s366, %s368
      %p372 = scmp.eq.s32.totalorder %s26, 0
      %p373 = por %p371, %p372
      %p374 = scmp.ne.s32.totalorder %s366, %s368
      %p375 = scmp.eq.s32.totalorder %s31, 1
      %p376 = por %p374, %p375
      %p377 = scmp.ne.s32.totalorder %s368, %s369
      %p378 = scmp.eq.s32.totalorder %s31, 0
      %p379 = por %p377, %p378
      %p380 = scmp.ne.s32.totalorder %s368, %s369
      %p381 = scmp.eq.s32.totalorder %s32, 1
      %p382 = por %p380, %p381
      %p384 = scmp.ne.s32.totalorder %s369, %s383
      %p385 = scmp.eq.s32.totalorder %s32, 0
      %p386 = por %p384, %p385
      %s388 = sadd.s32 %s387, 1
      %p391 = scmp.eq.s32.totalorder %s26, 1
      %p392 = scmp.ne.s32.totalorder %s387, %s389
      %p393 = scmp.eq.s32.totalorder %s26, 0
      %p394 = por %p392, %p393
      %p395 = scmp.ne.s32.totalorder %s387, %s389
      %p396 = scmp.eq.s32.totalorder %s31, 1
      %p397 = por %p395, %p396
      %p398 = scmp.ne.s32.totalorder %s389, %s390
      %p399 = scmp.eq.s32.totalorder %s31, 0
      %p400 = por %p398, %p399
      %p401 = scmp.ne.s32.totalorder %s389, %s390
      %p402 = scmp.eq.s32.totalorder %s32, 1
      %p403 = por %p401, %p402
      %p405 = scmp.ne.s32.totalorder %s390, %s404
      %p406 = scmp.eq.s32.totalorder %s32, 0
      %p407 = por %p405, %p406
      %s408 = ssub.s32 %s33, %s45
      %s409 = ssub.s32 %s34, %s41
      %s410 = sor.u32 %s408, %s409
      %p411 = scmp.eq.s32.totalorder %s410, 0
      %s413 = sadd.s32 %s412, 1
      %s414 = scalar_select %p411, %s412, %s413
      %p417 = pneg %p411
      %p418 = scmp.eq.s32.totalorder %s26, 1
      %p419 = por %p417, %p418
      %p420 = scmp.ne.s32.totalorder %s412, %s415
      %p421 = scmp.eq.s32.totalorder %s26, 0
      %p422 = por %p420, %p421
      %p423 = scmp.ne.s32.totalorder %s412, %s415
      %p424 = scmp.eq.s32.totalorder %s31, 1
      %p425 = por %p423, %p424
      %p426 = scmp.ne.s32.totalorder %s415, %s416
      %p427 = scmp.eq.s32.totalorder %s31, 0
      %p428 = por %p426, %p427
      %p429 = scmp.ne.s32.totalorder %s415, %s416
      %p430 = scmp.eq.s32.totalorder %s32, 1
      %p431 = por %p429, %p430
      %p433 = scmp.ne.s32.totalorder %s416, %s432
      %p434 = scmp.eq.s32.totalorder %s32, 0
      %p435 = por %p433, %p434
      %p436 = scmp.le.s32.totalorder 1, %s26
      %p437 = scmp.lt.s32.totalorder %s26, 3
      %p438 = pnand %p436, %p437
      %p439 = pneg %p438
      // Predicated region
      $region9: #{tpu_custom_call.1} parent=5 // pred_check
        _
      $region10: #{tpu_custom_call.1} parent=5 // pred_check_branch
        %441 = sbr.rel (%p438) target = $region12
      $region11: #{tpu_custom_call.1} parent=5 // pred_region
        %s442 = ssub.s32 %s26, 1
        // Predicated region
        $region13: #{tpu_custom_call.1} parent=11 // pred_check
          %p443 = pneg %p85
        $region14: #{tpu_custom_call.1} parent=11 // pred_check_branch
          %445 = sbr.rel (%p443) target = $region16
        $region15: #{tpu_custom_call.1} parent=11 // pred_region
          _
        $region16: #{tpu_custom_call.1} parent=11 // pred_fallthru
          _
        // Predicated region
        $region17: #{tpu_custom_call.1} parent=11 // pred_check
          %p446 = pneg %p106
        $region18: #{tpu_custom_call.1} parent=11 // pred_check_branch
          %448 = sbr.rel (%p446) target = $region20
        $region19: #{tpu_custom_call.1} parent=11 // pred_region
          _
        $region20: #{tpu_custom_call.1} parent=11 // pred_fallthru
          _
        // Predicated region
        $region21: #{tpu_custom_call.1} parent=11 // pred_check
          %p449 = pneg %p127
        $region22: #{tpu_custom_call.1} parent=11 // pred_check_branch
          %451 = sbr.rel (%p449) target = $region24
        $region23: #{tpu_custom_call.1} parent=11 // pred_region
          _
        $region24: #{tpu_custom_call.1} parent=11 // pred_fallthru
          _
        // Predicated region
        $region25: #{tpu_custom_call.1} parent=11 // pred_check
          %p452 = pneg %p148
        $region26: #{tpu_custom_call.1} parent=11 // pred_check_branch
          %454 = sbr.rel (%p452) target = $region28
        $region27: #{tpu_custom_call.1} parent=11 // pred_region
          _
        $region28: #{tpu_custom_call.1} parent=11 // pred_fallthru
          _
        // Predicated region
        $region29: #{tpu_custom_call.1} parent=11 // pred_check
          %p455 = pneg %p169
        $region30: #{tpu_custom_call.1} parent=11 // pred_check_branch
          %457 = sbr.rel (%p455) target = $region32
        $region31: #{tpu_custom_call.1} parent=11 // pred_region
          _
        $region32: #{tpu_custom_call.1} parent=11 // pred_fallthru
          _
        // Predicated region
        $region33: #{tpu_custom_call.1} parent=11 // pred_check
          %p458 = pneg %p190
        $region34: #{tpu_custom_call.1} parent=11 // pred_check_branch
          %460 = sbr.rel (%p458) target = $region36
        $region35: #{tpu_custom_call.1} parent=11 // pred_region
          _
        $region36: #{tpu_custom_call.1} parent=11 // pred_fallthru
          _
        // Predicated region
        $region37: #{tpu_custom_call.1} parent=11 // pred_check
          %p461 = pneg %p211
        $region38: #{tpu_custom_call.1} parent=11 // pred_check_branch
          %463 = sbr.rel (%p461) target = $region40
        $region39: #{tpu_custom_call.1} parent=11 // pred_region
          _
        $region40: #{tpu_custom_call.1} parent=11 // pred_fallthru
          _
        // Predicated region
        $region41: #{tpu_custom_call.1} parent=11 // pred_check
          %p464 = pneg %p232
        $region42: #{tpu_custom_call.1} parent=11 // pred_check_branch
          %466 = sbr.rel (%p464) target = $region44
        $region43: #{tpu_custom_call.1} parent=11 // pred_region
          _
        $region44: #{tpu_custom_call.1} parent=11 // pred_fallthru
          _
        // Predicated region
        $region45: #{tpu_custom_call.1} parent=11 // pred_check
          %p467 = pneg %p253
        $region46: #{tpu_custom_call.1} parent=11 // pred_check_branch
          %469 = sbr.rel (%p467) target = $region48
        $region47: #{tpu_custom_call.1} parent=11 // pred_region
          _
        $region48: #{tpu_custom_call.1} parent=11 // pred_fallthru
          _
        // Predicated region
        $region49: #{tpu_custom_call.1} parent=11 // pred_check
          %p470 = pneg %p274
        $region50: #{tpu_custom_call.1} parent=11 // pred_check_branch
          %472 = sbr.rel (%p470) target = $region52
        $region51: #{tpu_custom_call.1} parent=11 // pred_region
          _
        $region52: #{tpu_custom_call.1} parent=11 // pred_fallthru
          _
        // Predicated region
        $region53: #{tpu_custom_call.1} parent=11 // pred_check
          %p473 = pneg %p295
        $region54: #{tpu_custom_call.1} parent=11 // pred_check_branch
          %475 = sbr.rel (%p473) target = $region56
        $region55: #{tpu_custom_call.1} parent=11 // pred_region
          _
        $region56: #{tpu_custom_call.1} parent=11 // pred_fallthru
          _
        // Predicated region
        $region57: #{tpu_custom_call.1} parent=11 // pred_check
          %p476 = pneg %p316
        $region58: #{tpu_custom_call.1} parent=11 // pred_check_branch
          %478 = sbr.rel (%p476) target = $region60
        $region59: #{tpu_custom_call.1} parent=11 // pred_region
          _
        $region60: #{tpu_custom_call.1} parent=11 // pred_fallthru
          _
        // Predicated region
        $region61: #{tpu_custom_call.1} parent=11 // pred_check
          %p479 = pneg %p337
        $region62: #{tpu_custom_call.1} parent=11 // pred_check_branch
          %481 = sbr.rel (%p479) target = $region64
        $region63: #{tpu_custom_call.1} parent=11 // pred_region
          _
        $region64: #{tpu_custom_call.1} parent=11 // pred_fallthru
          _
        // Predicated region
        $region65: #{tpu_custom_call.1} parent=11 // pred_check
          %p482 = pneg %p358
        $region66: #{tpu_custom_call.1} parent=11 // pred_check_branch
          %484 = sbr.rel (%p482) target = $region68
        $region67: #{tpu_custom_call.1} parent=11 // pred_region
          _
        $region68: #{tpu_custom_call.1} parent=11 // pred_fallthru
          _
        // Predicated region
        $region69: #{tpu_custom_call.1} parent=11 // pred_check
          %p485 = pneg %p379
        $region70: #{tpu_custom_call.1} parent=11 // pred_check_branch
          %487 = sbr.rel (%p485) target = $region72
        $region71: #{tpu_custom_call.1} parent=11 // pred_region
          _
        $region72: #{tpu_custom_call.1} parent=11 // pred_fallthru
          _
        // Predicated region
        $region73: #{tpu_custom_call.1} parent=11 // pred_check
          %p488 = pneg %p400
        $region74: #{tpu_custom_call.1} parent=11 // pred_check_branch
          %490 = sbr.rel (%p488) target = $region76
        $region75: #{tpu_custom_call.1} parent=11 // pred_region
          _
        $region76: #{tpu_custom_call.1} parent=11 // pred_fallthru
          _
      $region12: #{tpu_custom_call.1} parent=5 // pred_fallthru
        _
      %p491 = scmp.lt.s32.totalorder %s26, 2
      // Predicated region
      $region77: #{tpu_custom_call.1} parent=5 // pred_check
        %p492 = pneg %p491
      $region78: #{tpu_custom_call.1} parent=5 // pred_check_branch
        %494 = sbr.rel (%p492) target = $region80
      $region79: #{tpu_custom_call.1} parent=5 // pred_region
        // Predicated region
        $region81: #{tpu_custom_call.1} parent=79 // pred_check
          %p495 = pneg %p58
        $region82: #{tpu_custom_call.1} parent=79 // pred_check_branch
          %497 = sbr.rel (%p495) target = $region84
        $region83: #{tpu_custom_call.1} parent=79 // pred_region
          %p498 = scmp.lt.s32.totalorder %s33, 1
          %s499 = scalar_select %p498, %s33, 1
          %s500 = smul.addr %s499, 8
          %s501 = scalar_lea.vmem %s0, %s500
        $region84: #{tpu_custom_call.1} parent=79 // pred_fallthru
          _
      $region80: #{tpu_custom_call.1} parent=5 // pred_fallthru
        _
      %p502 = scmp.le.s32.totalorder 1, %s26
      %p503 = scmp.lt.s32.totalorder %s26, 3
      %p504 = pnand %p502, %p503
      %p505 = pneg %p504
      // Predicated region
      $region85: #{tpu_custom_call.1} parent=5 // pred_check
        _
      $region86: #{tpu_custom_call.1} parent=5 // pred_check_branch
        %507 = sbr.rel (%p504) target = $region88
      $region87: #{tpu_custom_call.1} parent=5 // pred_region
        %s508 = ssub.s32 %s26, 1
        %p509 = scmp.lt.s32.totalorder %s35, 1
        %s510 = scalar_select %p509, %s35, 1
        %s511 = smul.addr %s510, 8
        %s512 = scalar_lea.vmem %s0, %s511
        %p513 = pneg %p64
        %p514 = pneg %p61
        %p515 = pneg %p85
        %p516 = pneg %p82
        %p517 = pneg %p106
        %p518 = pneg %p103
        %p519 = pneg %p127
        %p520 = pneg %p124
        %p521 = pneg %p148
        %p522 = pneg %p145
        %p523 = pneg %p169
        %p524 = pneg %p166
        %p525 = pneg %p190
        %p526 = pneg %p187
        %p527 = pneg %p211
        %p528 = pneg %p208
        %p529 = pneg %p232
        %p530 = pneg %p229
        %p531 = pneg %p253
        %p532 = pneg %p250
        %p533 = pneg %p274
        %p534 = pneg %p271
        %p535 = pneg %p295
        %p536 = pneg %p292
        %p537 = pneg %p316
        %p538 = pneg %p313
        %p539 = pneg %p337
        %p540 = pneg %p334
        %p541 = pneg %p358
        %p542 = pneg %p355
        %p543 = pneg %p379
        %p544 = pneg %p376
        %p545 = pneg %p400
        %p546 = pneg %p397
        %p547 = pneg %p428
        %p548 = pneg %p425
        %s549 = sand.u32 %s415, 1
        %s550 = scalar_lea.sflag [#allocation6], %s549
        %s551 = sand.u32 %s415, 1
        %s552 = smul.addr %s551, 8
        %s553 = scalar_lea.vmem [#allocation5], %s552
        %p554 = scmp.lt.s32.totalorder %s35, 1
        %s555 = scalar_select %p554, %s35, 1
        %s556 = smul.addr %s555, 8
        %s557 = scalar_lea.vmem %s0, %s556
        %p559 = scmp.eq.s32.totalorder %s36, 0
        // Predicated region
        $region89: #{tpu_custom_call.1} parent=87 // pred_check
          %p560 = pneg %p559
        $region90: #{tpu_custom_call.1} parent=87 // pred_check_branch
          %562 = sbr.rel (%p560) target = $region92
        $region91: #{tpu_custom_call.1} parent=87 // pred_region
          %v563 = vld [vmem:[%s557] sm:$0xff]
          %v564 = vld [vmem:[%s1] sm:$0x1]
          %v565 = vld [vmem:[%s2] sm:$0x1]
          %vm566 = vcmask 261120
          %v567 = vsel %vm566, %v563, 0.0
          %568 = vadd.xlane.f32.xlu0 %v567
          %v569 = vpop.xlane.xlu0 %568
          %v570 = vrcp.pop 32.0
          %v571 = vmul.f32 %v569, %v570
          %v572 = vsub.f32 %v563, %v571
          %v573 = vmul.f32 %v572, %v572
          %v574 = vsel %vm566, %v573, 0.0
          %575 = vadd.xlane.f32.xlu0 %v574
          %v576 = vpop.xlane.xlu0 %575
          %v577 = vmul.f32 %v576, %v570
          %v578 = vadd.f32 %v577, 1e-06
          %v579 = vrsqrt.pop %v578
          %v580 = vmul.f32 %v572, %v579
          %v582 = vlaneseq
          %v583 = vshrl.u32 %v582, 7
          %v584 = vsub.s32 0, %v583
          %v585 = vrot.slane %v564, %v584
          %v587 = vmul.f32 %v580, %v585
          %v589 = vlaneseq
          %v590 = vshrl.u32 %v589, 7
          %v591 = vsub.s32 0, %v590
          %v592 = vrot.slane %v565, %v591
          %v594 = vadd.f32 %v587, %v592
          %v595 = vpack.c.bf16 %v594, %v594
          loop: start=0, step=1, limit=4
          $region93: #{tpu_custom_call.1} parent=91 // loop_pre_header
            _
          $region94: #{tpu_custom_call.1} parent=91 // loop_header
            %s597 = sphi 0, %s601
            %p598 = scmp.ge.s32.totalorder %s597, 4
          $region95: #{tpu_custom_call.1} parent=91 // loop_header_branch
            %600 = sbr.rel (%p598) target = $region99
          $region96: #{tpu_custom_call.1} parent=91 // loop_body
            %s602 = smul.u32 %s597, 4
            %s603 = smul.addr %s602, 4
            %s604 = scalar_lea.vmem %s5, %s603
            %v605 = vld [vmem:[%s604] sm:$0xf]
            %v606 = vld [vmem:[%s604 + $0x4] sm:$0xf]
            %v607 = vld [vmem:[%s604 + $0x8] sm:$0xf]
            %v608 = vld [vmem:[%s604 + $0xc] sm:$0xf]
            %s609 = scalar_lea.vmem %s6, %s597
            %v610 = vld [vmem:[%s609] sm:$0x1]
            %v612 = vlaneseq
            %v613 = vshrl.u32 %v612, 7
            %v614 = vsub.s32 0, %v613
            %v615 = vrot.slane %v610, %v614
            %v621 = vunpack.c.l.b16 %v605
            %v622 = vunpack.c.l.b16 %v606
            %v623 = vunpack.c.l.b16 %v607
            %v624 = vunpack.c.l.b16 %v608
            %v625 = vpack.c.b16 %v622, %v621
            %v626 = vpack.c.b16 %v624, %v623
            %v630 = vsel %vm566, %v595, 0
            %632 = vmatprep.subr.bf16.mxu0 0
            %633 = vmatpush1.bf16.msra.mxu0 %v625
            %634 = vmatprep.subr.bf16.mxu0 0
            %635 = vmatpush1.bf16.msra.mxu0 %v626
            %636 = vmatprep.subr.bf16.mxu0 0
            %637 = vmatpush1.bf16.msra.mxu0 0
            %638 = vmatprep.subr.bf16.mxu0 0
            %639 = vmatpush1.bf16.msra.mxu0 0
            %640 = vmatprep.subr.bf16.mxu0 0
            %641 = vmatpush1.bf16.msra.mxu0 0
            %642 = vmatprep.subr.bf16.mxu0 0
            %643 = vmatpush1.bf16.msra.mxu0 0
            %644 = vmatprep.subr.bf16.mxu0 0
            %645 = vmatpush1.bf16.msra.mxu0 0
            %646 = vmatprep.subr.bf16.mxu0 0
            %647 = vmatpush1.bf16.msra.mxu0 0
            %648 = vmatprep.subr.bf16.mxu0 0
            %649 = vmatpush1.bf16.msra.mxu0 0
            %650 = vmatprep.subr.bf16.mxu0 0
            %651 = vmatpush1.bf16.msra.mxu0 0
            %652 = vmatprep.subr.bf16.mxu0 0
            %653 = vmatpush1.bf16.msra.mxu0 0
            %654 = vmatprep.subr.bf16.mxu0 0
            %655 = vmatpush1.bf16.msra.mxu0 0
            %656 = vmatprep.subr.bf16.mxu0 0
            %657 = vmatpush1.bf16.msra.mxu0 0
            %658 = vmatprep.subr.bf16.mxu0 0
            %659 = vmatpush1.bf16.msra.mxu0 0
            %660 = vmatprep.subr.bf16.mxu0 0
            %661 = vmatpush1.bf16.msra.mxu0 0
            %662 = vmatprep.subr.bf16.mxu0 0
            %663 = vmatpush1.bf16.msra.mxu0 0
            %664 = vmatprep.mubr.bf16.mxu0 0
            %665 = vmatmul.mubr.bf16.gmra.mrb[0].mxu0 %v630
            %v666 = vpop.f32.mrb[0].mxu0
            %v667 = vadd.f32 %v615, %v666
            %v668 = vpop.f32.mrb[0].mxu0
            %v669 = vpop.f32.mrb[0].mxu0
            %v670 = vpop.f32.mrb[0].mxu0
            %671 = vdwg.mxu0
            %v672 = vpack.c.bf16 %v667, %v667
            %s673 = smul.addr %s597, 4
            %s674 = scalar_lea.vmem [#allocation2], %s673
            %675 = vst [vmem:[%s674] sm:$0xf] %v672
            %s676 = smul.addr %s602, 4
            %s677 = scalar_lea.vmem %s7, %s676
            %v678 = vld [vmem:[%s677] sm:$0xf]
            %v679 = vld [vmem:[%s677 + $0x4] sm:$0xf]
            %v680 = vld [vmem:[%s677 + $0x8] sm:$0xf]
            %v681 = vld [vmem:[%s677 + $0xc] sm:$0xf]
            %s682 = scalar_lea.vmem %s8, %s597
            %v683 = vld [vmem:[%s682] sm:$0x1]
            %v685 = vlaneseq
            %v686 = vshrl.u32 %v685, 7
            %v687 = vsub.s32 0, %v686
            %v688 = vrot.slane %v683, %v687
            %v694 = vunpack.c.l.b16 %v678
            %v695 = vunpack.c.l.b16 %v679
            %v696 = vunpack.c.l.b16 %v680
            %v697 = vunpack.c.l.b16 %v681
            %v698 = vpack.c.b16 %v695, %v694
            %v699 = vpack.c.b16 %v697, %v696
            %702 = vmatprep.subr.bf16.mxu0 0
            %703 = vmatpush1.bf16.msra.mxu0 %v698
            %704 = vmatprep.subr.bf16.mxu0 0
            %705 = vmatpush1.bf16.msra.mxu0 %v699
            %706 = vmatprep.subr.bf16.mxu0 0
            %707 = vmatpush1.bf16.msra.mxu0 0
            %708 = vmatprep.subr.bf16.mxu0 0
            %709 = vmatpush1.bf16.msra.mxu0 0
            %710 = vmatprep.subr.bf16.mxu0 0
            %711 = vmatpush1.bf16.msra.mxu0 0
            %712 = vmatprep.subr.bf16.mxu0 0
            %713 = vmatpush1.bf16.msra.mxu0 0
            %714 = vmatprep.subr.bf16.mxu0 0
            %715 = vmatpush1.bf16.msra.mxu0 0
            %716 = vmatprep.subr.bf16.mxu0 0
            %717 = vmatpush1.bf16.msra.mxu0 0
            %718 = vmatprep.subr.bf16.mxu0 0
            %719 = vmatpush1.bf16.msra.mxu0 0
            %720 = vmatprep.subr.bf16.mxu0 0
            %721 = vmatpush1.bf16.msra.mxu0 0
            %722 = vmatprep.subr.bf16.mxu0 0
            %723 = vmatpush1.bf16.msra.mxu0 0
            %724 = vmatprep.subr.bf16.mxu0 0
            %725 = vmatpush1.bf16.msra.mxu0 0
            %726 = vmatprep.subr.bf16.mxu0 0
            %727 = vmatpush1.bf16.msra.mxu0 0
            %728 = vmatprep.subr.bf16.mxu0 0
            %729 = vmatpush1.bf16.msra.mxu0 0
            %730 = vmatprep.subr.bf16.mxu0 0
            %731 = vmatpush1.bf16.msra.mxu0 0
            %732 = vmatprep.subr.bf16.mxu0 0
            %733 = vmatpush1.bf16.msra.mxu0 0
            %734 = vmatprep.mubr.bf16.mxu0 0
            %735 = vmatmul.mubr.bf16.gmra.mrb[0].mxu0 %v630
            %v736 = vpop.f32.mrb[0].mxu0
            %v737 = vadd.f32 %v688, %v736
            %v738 = vpop.f32.mrb[0].mxu0
            %v739 = vpop.f32.mrb[0].mxu0
            %v740 = vpop.f32.mrb[0].mxu0
            %741 = vdwg.mxu0
            %v742 = vpack.c.bf16 %v737, %v737
            %s743 = smul.addr %s597, 4
            %s744 = scalar_lea.vmem [#allocation3], %s743
            %745 = vst [vmem:[%s744] sm:$0xf] %v742
          $region97: #{tpu_custom_call.1} parent=91 // loop_footer
            %s601 = sadd.s32 1, %s597
          $region98: #{tpu_custom_call.1} parent=91 // loop_footer_branch
            %596 = sbr.rel target = $region94
          $region99: #{tpu_custom_call.1} parent=91 // loop_exit
            _
        $region92: #{tpu_custom_call.1} parent=87 // pred_fallthru
          _
        %s746 = smul.u32 %s36, 8
        %s747 = scalar_lea.vmem %s557, %s746
        %v748 = vld [vmem:[%s747] sm:$0xff]
        %v749 = vld [vmem:[%s1] sm:$0x1]
        %v750 = vld [vmem:[%s2] sm:$0x1]
        %vm751 = vcmask 261120
        %v752 = vsel %vm751, %v748, 0.0
        %753 = vadd.xlane.f32.xlu0 %v752
        %v754 = vpop.xlane.xlu0 %753
        %v755 = vrcp.pop 32.0
        %v756 = vmul.f32 %v754, %v755
        %v757 = vsub.f32 %v748, %v756
        %v758 = vmul.f32 %v757, %v757
        %v759 = vsel %vm751, %v758, 0.0
        %760 = vadd.xlane.f32.xlu0 %v759
        %v761 = vpop.xlane.xlu0 %760
        %v762 = vmul.f32 %v761, %v755
        %v763 = vadd.f32 %v762, 1e-06
        %v764 = vrsqrt.pop %v763
        %v765 = vmul.f32 %v757, %v764
        %v767 = vlaneseq
        %v768 = vshrl.u32 %v767, 7
        %v769 = vsub.s32 0, %v768
        %v770 = vrot.slane %v749, %v769
        %v772 = vmul.f32 %v765, %v770
        %v774 = vlaneseq
        %v775 = vshrl.u32 %v774, 7
        %v776 = vsub.s32 0, %v775
        %v777 = vrot.slane %v750, %v776
        %v779 = vadd.f32 %v772, %v777
        %v780 = vpack.c.bf16 %v779, %v779
        %781 = vst.msk [vmem:[#allocation4] sm:$0xff] %vm751, 0.0
        loop: start=0, step=1, limit=4
        $region100: #{tpu_custom_call.1} parent=87 // loop_pre_header
          _
        $region101: #{tpu_custom_call.1} parent=87 // loop_header
          %s783 = sphi 0, %s787
          %p784 = scmp.ge.s32.totalorder %s783, 4
        $region102: #{tpu_custom_call.1} parent=87 // loop_header_branch
          %786 = sbr.rel (%p784) target = $region106
        $region103: #{tpu_custom_call.1} parent=87 // loop_body
          %s788 = smul.u32 %s783, 4
          %s789 = smul.addr %s788, 4
          %s790 = scalar_lea.vmem %s3, %s789
          %v791 = vld [vmem:[%s790] sm:$0xf]
          %v792 = vld [vmem:[%s790 + $0x4] sm:$0xf]
          %v793 = vld [vmem:[%s790 + $0x8] sm:$0xf]
          %v794 = vld [vmem:[%s790 + $0xc] sm:$0xf]
          %s795 = scalar_lea.vmem %s4, %s783
          %v796 = vld [vmem:[%s795] sm:$0x1]
          %v798 = vlaneseq
          %v799 = vshrl.u32 %v798, 7
          %v800 = vsub.s32 0, %v799
          %v801 = vrot.slane %v796, %v800
          %v807 = vunpack.c.l.b16 %v791
          %v808 = vunpack.c.l.b16 %v792
          %v809 = vunpack.c.l.b16 %v793
          %v810 = vunpack.c.l.b16 %v794
          %v811 = vpack.c.b16 %v808, %v807
          %v812 = vpack.c.b16 %v810, %v809
          %v816 = vsel %vm751, %v780, 0
          %818 = vmatprep.subr.bf16.mxu0 0
          %819 = vmatpush1.bf16.msra.mxu0 %v811
          %820 = vmatprep.subr.bf16.mxu0 0
          %821 = vmatpush1.bf16.msra.mxu0 %v812
          %822 = vmatprep.subr.bf16.mxu0 0
          %823 = vmatpush1.bf16.msra.mxu0 0
          %824 = vmatprep.subr.bf16.mxu0 0
          %825 = vmatpush1.bf16.msra.mxu0 0
          %826 = vmatprep.subr.bf16.mxu0 0
          %827 = vmatpush1.bf16.msra.mxu0 0
          %828 = vmatprep.subr.bf16.mxu0 0
          %829 = vmatpush1.bf16.msra.mxu0 0
          %830 = vmatprep.subr.bf16.mxu0 0
          %831 = vmatpush1.bf16.msra.mxu0 0
          %832 = vmatprep.subr.bf16.mxu0 0
          %833 = vmatpush1.bf16.msra.mxu0 0
          %834 = vmatprep.subr.bf16.mxu0 0
          %835 = vmatpush1.bf16.msra.mxu0 0
          %836 = vmatprep.subr.bf16.mxu0 0
          %837 = vmatpush1.bf16.msra.mxu0 0
          %838 = vmatprep.subr.bf16.mxu0 0
          %839 = vmatpush1.bf16.msra.mxu0 0
          %840 = vmatprep.subr.bf16.mxu0 0
          %841 = vmatpush1.bf16.msra.mxu0 0
          %842 = vmatprep.subr.bf16.mxu0 0
          %843 = vmatpush1.bf16.msra.mxu0 0
          %844 = vmatprep.subr.bf16.mxu0 0
          %845 = vmatpush1.bf16.msra.mxu0 0
          %846 = vmatprep.subr.bf16.mxu0 0
          %847 = vmatpush1.bf16.msra.mxu0 0
          %848 = vmatprep.subr.bf16.mxu0 0
          %849 = vmatpush1.bf16.msra.mxu0 0
          %850 = vmatprep.mubr.bf16.mxu0 0
          %851 = vmatmul.mubr.bf16.gmra.mrb[0].mxu0 %v816
          %v852 = vpop.f32.mrb[0].mxu0
          %v853 = vadd.f32 %v801, %v852
          %v854 = vpop.f32.mrb[0].mxu0
          %v855 = vpop.f32.mrb[0].mxu0
          %v856 = vpop.f32.mrb[0].mxu0
          %857 = vdwg.mxu0
          %v858 = vpack.c.bf16 %v853, %v853
          %s859 = smul.addr %s783, 4
          %s860 = scalar_lea.vmem [#allocation2], %s859
          %v861 = vld [vmem:[%s860] sm:$0xf]
          %862 = vmatprep.subr.bf16.mxu0 0
          %863 = vmatpush1.bf16.xpose.msra.mxu0 %v861
          %864 = vmatprep.subr.bf16.mxu0 0
          %865 = vmatpush1.bf16.xpose.msra.mxu0 0
          %866 = vmatprep.subr.bf16.mxu0 0
          %867 = vmatpush1.bf16.xpose.msra.mxu0 0
          %868 = vmatprep.subr.bf16.mxu0 0
          %869 = vmatpush1.bf16.xpose.msra.mxu0 0
          %870 = vmatprep.subr.bf16.mxu0 0
          %871 = vmatpush1.bf16.xpose.msra.mxu0 0
          %872 = vmatprep.subr.bf16.mxu0 0
          %873 = vmatpush1.bf16.xpose.msra.mxu0 0
          %874 = vmatprep.subr.bf16.mxu0 0
          %875 = vmatpush1.bf16.xpose.msra.mxu0 0
          %876 = vmatprep.subr.bf16.mxu0 0
          %877 = vmatpush1.bf16.xpose.msra.mxu0 0
          %878 = vmatprep.subr.bf16.mxu0 0
          %879 = vmatpush1.bf16.xpose.msra.mxu0 0
          %880 = vmatprep.subr.bf16.mxu0 0
          %881 = vmatpush1.bf16.xpose.msra.mxu0 0
          %882 = vmatprep.subr.bf16.mxu0 0
          %883 = vmatpush1.bf16.xpose.msra.mxu0 0
          %884 = vmatprep.subr.bf16.mxu0 0
          %885 = vmatpush1.bf16.xpose.msra.mxu0 0
          %886 = vmatprep.subr.bf16.mxu0 0
          %887 = vmatpush1.bf16.xpose.msra.mxu0 0
          %888 = vmatprep.subr.bf16.mxu0 0
          %889 = vmatpush1.bf16.xpose.msra.mxu0 0
          %890 = vmatprep.subr.bf16.mxu0 0
          %891 = vmatpush1.bf16.xpose.msra.mxu0 0
          %892 = vmatprep.subr.bf16.mxu0 0
          %893 = vmatpush1.bf16.xpose.msra.mxu0 0
          %894 = vmatprep.mubr.bf16.mxu0 0
          %895 = vmatmul.mubr.bf16.gmra.mrb[0].mxu0 %v858
          %v896 = vpop.f32.mrb[0].mxu0
          %v897 = vadd.f32 0.0, %v896
          %v898 = vpop.f32.mrb[0].mxu0
          %v899 = vpop.f32.mrb[0].mxu0
          %v900 = vpop.f32.mrb[0].mxu0
          %901 = vdwg.mxu0
          %vm902 = vcmask 64512
          %v903 = vsel %vm902, %v897, -inf
          %904 = vmax.xlane.f32.xlu0 %v903
          %v905 = vpop.xlane.xlu0 %904
          %v906 = vsub.f32 %v897, %v905
          %v907 = vmul.f32 %v906, 1.442695
          %v908 = vpow.pop %v907
          %v909 = vsel %vm902, %v908, 0.0
          %910 = vadd.xlane.f32.xlu0 %v909
          %v911 = vpop.xlane.xlu0 %910
          %v912 = vrcp.pop %v911
          %v913 = vmul.f32 %v908, %v912
          %v914 = vpack.c.bf16 %v913, %v913
          %s915 = smul.addr %s783, 4
          %s916 = scalar_lea.vmem [#allocation3], %s915
          %v917 = vld [vmem:[%s916] sm:$0xf]
          %v919 = vsel %vm902, %v914, 0
          %vm921 = vcmask 1043456
          %v923 = vsel %vm921, %v917, 0
          %925 = vmatprep.subr.bf16.mxu0 0
          %926 = vmatpush1.bf16.msra.mxu0 %v923
          %927 = vmatprep.subr.bf16.mxu0 0
          %928 = vmatpush1.bf16.msra.mxu0 0
          %929 = vmatprep.subr.bf16.mxu0 0
          %930 = vmatpush1.bf16.msra.mxu0 0
          %931 = vmatprep.subr.bf16.mxu0 0
          %932 = vmatpush1.bf16.msra.mxu0 0
          %933 = vmatprep.subr.bf16.mxu0 0
          %934 = vmatpush1.bf16.msra.mxu0 0
          %935 = vmatprep.subr.bf16.mxu0 0
          %936 = vmatpush1.bf16.msra.mxu0 0
          %937 = vmatprep.subr.bf16.mxu0 0
          %938 = vmatpush1.bf16.msra.mxu0 0
          %939 = vmatprep.subr.bf16.mxu0 0
          %940 = vmatpush1.bf16.msra.mxu0 0
          %941 = vmatprep.subr.bf16.mxu0 0
          %942 = vmatpush1.bf16.msra.mxu0 0
          %943 = vmatprep.subr.bf16.mxu0 0
          %944 = vmatpush1.bf16.msra.mxu0 0
          %945 = vmatprep.subr.bf16.mxu0 0
          %946 = vmatpush1.bf16.msra.mxu0 0
          %947 = vmatprep.subr.bf16.mxu0 0
          %948 = vmatpush1.bf16.msra.mxu0 0
          %949 = vmatprep.subr.bf16.mxu0 0
          %950 = vmatpush1.bf16.msra.mxu0 0
          %951 = vmatprep.subr.bf16.mxu0 0
          %952 = vmatpush1.bf16.msra.mxu0 0
          %953 = vmatprep.subr.bf16.mxu0 0
          %954 = vmatpush1.bf16.msra.mxu0 0
          %955 = vmatprep.subr.bf16.mxu0 0
          %956 = vmatpush1.bf16.msra.mxu0 0
          %957 = vmatprep.mubr.bf16.mxu0 0
          %958 = vmatmul.mubr.bf16.gmra.mrb[0].mxu0 %v919
          %v959 = vpop.f32.mrb[0].mxu0
          %v960 = vadd.f32 0.0, %v959
          %v961 = vpop.f32.mrb[0].mxu0
          %v962 = vpop.f32.mrb[0].mxu0
          %v963 = vpop.f32.mrb[0].mxu0
          %964 = vdwg.mxu0
          %v965 = vld [vmem:[#allocation4] sm:$0xff]
          %v966 = vpack.c.bf16 %v960, %v960
          %s967 = smul.u32 %s783, 16
          %s968 = smul.addr %s967, 4
          %s969 = scalar_lea.vmem %s9, %s968
          %v970 = vld [vmem:[%s969] sm:$0xf]
          %v971 = vld [vmem:[%s969 + $0x4] sm:$0xf]
          %v972 = vld [vmem:[%s969 + $0x8] sm:$0xf]
          %v973 = vld [vmem:[%s969 + $0xc] sm:$0xf]
          %v974 = vld [vmem:[%s969 + $0x10] sm:$0xf]
          %v975 = vld [vmem:[%s969 + $0x14] sm:$0xf]
          %v976 = vld [vmem:[%s969 + $0x18] sm:$0xf]
          %v977 = vld [vmem:[%s969 + $0x1c] sm:$0xf]
          %v978 = vld [vmem:[%s969 + $0x20] sm:$0xf]
          %v979 = vld [vmem:[%s969 + $0x24] sm:$0xf]
          %v980 = vld [vmem:[%s969 + $0x28] sm:$0xf]
          %v981 = vld [vmem:[%s969 + $0x2c] sm:$0xf]
          %v982 = vld [vmem:[%s969 + $0x30] sm:$0xf]
          %v983 = vld [vmem:[%s969 + $0x34] sm:$0xf]
          %v984 = vld [vmem:[%s969 + $0x38] sm:$0xf]
          %v985 = vld [vmem:[%s969 + $0x3c] sm:$0xf]
          %v1002 = vunpack.c.l.b16 %v970
          %v1003 = vunpack.c.l.b16 %v971
          %v1004 = vunpack.c.l.b16 %v972
          %v1005 = vunpack.c.l.b16 %v973
          %v1006 = vunpack.c.l.b16 %v974
          %v1007 = vunpack.c.l.b16 %v975
          %v1008 = vunpack.c.l.b16 %v976
          %v1009 = vunpack.c.l.b16 %v977
          %v1010 = vunpack.c.l.b16 %v978
          %v1011 = vunpack.c.l.b16 %v979
          %v1012 = vunpack.c.l.b16 %v980
          %v1013 = vunpack.c.l.b16 %v981
          %v1014 = vunpack.c.l.b16 %v982
          %v1015 = vunpack.c.l.b16 %v983
          %v1016 = vunpack.c.l.b16 %v984
          %v1017 = vunpack.c.l.b16 %v985
          %v1018 = vpack.c.b16 %v1003, %v1002
          %v1019 = vpack.c.b16 %v1005, %v1004
          %v1020 = vpack.c.b16 %v1007, %v1006
          %v1021 = vpack.c.b16 %v1009, %v1008
          %v1022 = vpack.c.b16 %v1011, %v1010
          %v1023 = vpack.c.b16 %v1013, %v1012
          %v1024 = vpack.c.b16 %v1015, %v1014
          %v1025 = vpack.c.b16 %v1017, %v1016
          %1034 = vmatprep.subr.bf16.mxu0 0
          %1035 = vmatpush1.bf16.msra.mxu0 %v1018
          %1036 = vmatprep.subr.bf16.mxu0 0
          %1037 = vmatpush1.bf16.msra.mxu0 %v1019
          %1038 = vmatprep.subr.bf16.mxu0 0
          %1039 = vmatpush1.bf16.msra.mxu0 %v1020
          %1040 = vmatprep.subr.bf16.mxu0 0
          %1041 = vmatpush1.bf16.msra.mxu0 %v1021
          %1042 = vmatprep.subr.bf16.mxu0 0
          %1043 = vmatpush1.bf16.msra.mxu0 %v1022
          %1044 = vmatprep.subr.bf16.mxu0 0
          %1045 = vmatpush1.bf16.msra.mxu0 %v1023
          %1046 = vmatprep.subr.bf16.mxu0 0
          %1047 = vmatpush1.bf16.msra.mxu0 %v1024
          %1048 = vmatprep.subr.bf16.mxu0 0
          %1049 = vmatpush1.bf16.msra.mxu0 %v1025
          %1050 = vmatprep.subr.bf16.mxu0 0
          %1051 = vmatpush1.bf16.msra.mxu0 0
          %1052 = vmatprep.subr.bf16.mxu0 0
          %1053 = vmatpush1.bf16.msra.mxu0 0
          %1054 = vmatprep.subr.bf16.mxu0 0
          %1055 = vmatpush1.bf16.msra.mxu0 0
          %1056 = vmatprep.subr.bf16.mxu0 0
          %1057 = vmatpush1.bf16.msra.mxu0 0
          %1058 = vmatprep.subr.bf16.mxu0 0
          %1059 = vmatpush1.bf16.msra.mxu0 0
          %1060 = vmatprep.subr.bf16.mxu0 0
          %1061 = vmatpush1.bf16.msra.mxu0 0
          %1062 = vmatprep.subr.bf16.mxu0 0
          %1063 = vmatpush1.bf16.msra.mxu0 0
          %1064 = vmatprep.subr.bf16.mxu0 0
          %1065 = vmatpush1.bf16.msra.mxu0 0
          %1066 = vmatprep.mubr.bf16.mxu0 0
          %1067 = vmatmul.mubr.bf16.gmra.mrb[0].mxu0 %v966
          %v1068 = vpop.f32.mrb[0].mxu0
          %v1069 = vadd.f32 0.0, %v1068
          %v1070 = vpop.f32.mrb[0].mxu0
          %v1071 = vpop.f32.mrb[0].mxu0
          %v1072 = vpop.f32.mrb[0].mxu0
          %1073 = vdwg.mxu0
          %v1074 = vadd.f32 %v965, %v1069
          %1075 = vst.msk [vmem:[#allocation4] sm:$0xff] %vm751, %v1074
        $region104: #{tpu_custom_call.1} parent=87 // loop_footer
          %s787 = sadd.s32 1, %s783
        $region105: #{tpu_custom_call.1} parent=87 // loop_footer_branch
          %782 = sbr.rel target = $region101
        $region106: #{tpu_custom_call.1} parent=87 // loop_exit
          _
        %v1076 = vld [vmem:[#allocation4] sm:$0xff]
        %v1077 = vadd.f32 %v748, %v1076
        %v1078 = vld [vmem:[%s10] sm:$0x1]
        %v1080 = vlaneseq
        %v1081 = vshrl.u32 %v1080, 7
        %v1082 = vsub.s32 0, %v1081
        %v1083 = vrot.slane %v1078, %v1082
        %v1085 = vadd.f32 %v1077, %v1083
        %v1086 = vld [vmem:[%s11] sm:$0x1]
        %v1087 = vld [vmem:[%s12] sm:$0x1]
        %v1088 = vsel %vm751, %v1085, 0.0
        %1089 = vadd.xlane.f32.xlu0 %v1088
        %v1090 = vpop.xlane.xlu0 %1089
        %v1091 = vmul.f32 %v1090, %v755
        %v1092 = vsub.f32 %v1085, %v1091
        %v1093 = vmul.f32 %v1092, %v1092
        %v1094 = vsel %vm751, %v1093, 0.0
        %1095 = vadd.xlane.f32.xlu0 %v1094
        %v1096 = vpop.xlane.xlu0 %1095
        %v1097 = vmul.f32 %v1096, %v755
        %v1098 = vadd.f32 %v1097, 1e-06
        %v1099 = vrsqrt.pop %v1098
        %v1100 = vmul.f32 %v1092, %v1099
        %v1102 = vlaneseq
        %v1103 = vshrl.u32 %v1102, 7
        %v1104 = vsub.s32 0, %v1103
        %v1105 = vrot.slane %v1086, %v1104
        %v1107 = vmul.f32 %v1100, %v1105
        %v1109 = vlaneseq
        %v1110 = vshrl.u32 %v1109, 7
        %v1111 = vsub.s32 0, %v1110
        %v1112 = vrot.slane %v1087, %v1111
        %v1114 = vadd.f32 %v1107, %v1112
        %v1115 = vpack.c.bf16 %v1114, %v1114
        %v1116 = vld [vmem:[%s13] sm:$0xf]
        %v1117 = vld [vmem:[%s13 + $0x4] sm:$0xf]
        %v1118 = vld [vmem:[%s13 + $0x8] sm:$0xf]
        %v1119 = vld [vmem:[%s13 + $0xc] sm:$0xf]
        %v1120 = vld [vmem:[%s14] sm:$0x1]
        %v1122 = vlaneseq
        %v1123 = vshrl.u32 %v1122, 7
        %v1124 = vsub.s32 0, %v1123
        %v1125 = vrot.slane %v1120, %v1124
        %v1131 = vunpack.c.l.b16 %v1116
        %v1132 = vunpack.c.l.b16 %v1117
        %v1133 = vunpack.c.l.b16 %v1118
        %v1134 = vunpack.c.l.b16 %v1119
        %v1135 = vpack.c.b16 %v1132, %v1131
        %v1136 = vpack.c.b16 %v1134, %v1133
        %v1140 = vsel %vm751, %v1115, 0
        %1142 = vmatprep.subr.bf16.mxu0 0
        %1143 = vmatpush1.bf16.msra.mxu0 %v1135
        %1144 = vmatprep.subr.bf16.mxu0 0
        %1145 = vmatpush1.bf16.msra.mxu0 %v1136
        %1146 = vmatprep.subr.bf16.mxu0 0
        %1147 = vmatpush1.bf16.msra.mxu0 0
        %1148 = vmatprep.subr.bf16.mxu0 0
        %1149 = vmatpush1.bf16.msra.mxu0 0
        %1150 = vmatprep.subr.bf16.mxu0 0
        %1151 = vmatpush1.bf16.msra.mxu0 0
        %1152 = vmatprep.subr.bf16.mxu0 0
        %1153 = vmatpush1.bf16.msra.mxu0 0
        %1154 = vmatprep.subr.bf16.mxu0 0
        %1155 = vmatpush1.bf16.msra.mxu0 0
        %1156 = vmatprep.subr.bf16.mxu0 0
        %1157 = vmatpush1.bf16.msra.mxu0 0
        %1158 = vmatprep.subr.bf16.mxu0 0
        %1159 = vmatpush1.bf16.msra.mxu0 0
        %1160 = vmatprep.subr.bf16.mxu0 0
        %1161 = vmatpush1.bf16.msra.mxu0 0
        %1162 = vmatprep.subr.bf16.mxu0 0
        %1163 = vmatpush1.bf16.msra.mxu0 0
        %1164 = vmatprep.subr.bf16.mxu0 0
        %1165 = vmatpush1.bf16.msra.mxu0 0
        %1166 = vmatprep.subr.bf16.mxu0 0
        %1167 = vmatpush1.bf16.msra.mxu0 0
        %1168 = vmatprep.subr.bf16.mxu0 0
        %1169 = vmatpush1.bf16.msra.mxu0 0
        %1170 = vmatprep.subr.bf16.mxu0 0
        %1171 = vmatpush1.bf16.msra.mxu0 0
        %1172 = vmatprep.subr.bf16.mxu0 0
        %1173 = vmatpush1.bf16.msra.mxu0 0
        %1174 = vmatprep.mubr.bf16.mxu0 0
        %1175 = vmatmul.mubr.bf16.gmra.mrb[0].mxu0 %v1140
        %v1176 = vpop.f32.mrb[0].mxu0
        %v1177 = vadd.f32 %v1125, %v1176
        %v1178 = vpop.f32.mrb[0].mxu0
        %v1179 = vpop.f32.mrb[0].mxu0
        %v1180 = vpop.f32.mrb[0].mxu0
        %1181 = vdwg.mxu0
        %v1182 = vmul.f32 %v1177, 0.5
        %v1183 = vmul.f32 %v1177, 0.044715
        %v1184 = vmul.f32 %v1183, %v1177
        %v1185 = vmul.f32 %v1184, %v1177
        %v1186 = vadd.f32 %v1177, %v1185
        %v1187 = vmul.f32 %v1186, 0.7978846
        %v1188 = vtanh.pop %v1187
        %v1189 = vadd.f32 %v1188, 1.0
        %v1190 = vmul.f32 %v1182, %v1189
        %v1191 = vpack.c.bf16 %v1190, %v1190
        %v1192 = vld [vmem:[%s15] sm:$0xf]
        %v1193 = vld [vmem:[%s15 + $0x4] sm:$0xf]
        %v1194 = vld [vmem:[%s15 + $0x8] sm:$0xf]
        %v1195 = vld [vmem:[%s15 + $0xc] sm:$0xf]
        %v1196 = vld [vmem:[%s15 + $0x10] sm:$0xf]
        %v1197 = vld [vmem:[%s15 + $0x14] sm:$0xf]
        %v1198 = vld [vmem:[%s15 + $0x18] sm:$0xf]
        %v1199 = vld [vmem:[%s15 + $0x1c] sm:$0xf]
        %v1200 = vld [vmem:[%s15 + $0x20] sm:$0xf]
        %v1201 = vld [vmem:[%s15 + $0x24] sm:$0xf]
        %v1202 = vld [vmem:[%s15 + $0x28] sm:$0xf]
        %v1203 = vld [vmem:[%s15 + $0x2c] sm:$0xf]
        %v1204 = vld [vmem:[%s15 + $0x30] sm:$0xf]
        %v1205 = vld [vmem:[%s15 + $0x34] sm:$0xf]
        %v1206 = vld [vmem:[%s15 + $0x38] sm:$0xf]
        %v1207 = vld [vmem:[%s15 + $0x3c] sm:$0xf]
        %v1208 = vld [vmem:[%s16] sm:$0x1]
        %v1210 = vlaneseq
        %v1211 = vshrl.u32 %v1210, 7
        %v1212 = vsub.s32 0, %v1211
        %v1213 = vrot.slane %v1208, %v1212
        %v1231 = vunpack.c.l.b16 %v1192
        %v1232 = vunpack.c.l.b16 %v1193
        %v1233 = vunpack.c.l.b16 %v1194
        %v1234 = vunpack.c.l.b16 %v1195
        %v1235 = vunpack.c.l.b16 %v1196
        %v1236 = vunpack.c.l.b16 %v1197
        %v1237 = vunpack.c.l.b16 %v1198
        %v1238 = vunpack.c.l.b16 %v1199
        %v1239 = vunpack.c.l.b16 %v1200
        %v1240 = vunpack.c.l.b16 %v1201
        %v1241 = vunpack.c.l.b16 %v1202
        %v1242 = vunpack.c.l.b16 %v1203
        %v1243 = vunpack.c.l.b16 %v1204
        %v1244 = vunpack.c.l.b16 %v1205
        %v1245 = vunpack.c.l.b16 %v1206
        %v1246 = vunpack.c.l.b16 %v1207
        %v1247 = vpack.c.b16 %v1232, %v1231
        %v1248 = vpack.c.b16 %v1234, %v1233
        %v1249 = vpack.c.b16 %v1236, %v1235
        %v1250 = vpack.c.b16 %v1238, %v1237
        %v1251 = vpack.c.b16 %v1240, %v1239
        %v1252 = vpack.c.b16 %v1242, %v1241
        %v1253 = vpack.c.b16 %v1244, %v1243
        %v1254 = vpack.c.b16 %v1246, %v1245
        %1263 = vmatprep.subr.bf16.mxu0 0
        %1264 = vmatpush1.bf16.msra.mxu0 %v1247
        %1265 = vmatprep.subr.bf16.mxu0 0
        %1266 = vmatpush1.bf16.msra.mxu0 %v1248
        %1267 = vmatprep.subr.bf16.mxu0 0
        %1268 = vmatpush1.bf16.msra.mxu0 %v1249
        %1269 = vmatprep.subr.bf16.mxu0 0
        %1270 = vmatpush1.bf16.msra.mxu0 %v1250
        %1271 = vmatprep.subr.bf16.mxu0 0
        %1272 = vmatpush1.bf16.msra.mxu0 %v1251
        %1273 = vmatprep.subr.bf16.mxu0 0
        %1274 = vmatpush1.bf16.msra.mxu0 %v1252
        %1275 = vmatprep.subr.bf16.mxu0 0
        %1276 = vmatpush1.bf16.msra.mxu0 %v1253
        %1277 = vmatprep.subr.bf16.mxu0 0
        %1278 = vmatpush1.bf16.msra.mxu0 %v1254
        %1279 = vmatprep.subr.bf16.mxu0 0
        %1280 = vmatpush1.bf16.msra.mxu0 0
        %1281 = vmatprep.subr.bf16.mxu0 0
        %1282 = vmatpush1.bf16.msra.mxu0 0
        %1283 = vmatprep.subr.bf16.mxu0 0
        %1284 = vmatpush1.bf16.msra.mxu0 0
        %1285 = vmatprep.subr.bf16.mxu0 0
        %1286 = vmatpush1.bf16.msra.mxu0 0
        %1287 = vmatprep.subr.bf16.mxu0 0
        %1288 = vmatpush1.bf16.msra.mxu0 0
        %1289 = vmatprep.subr.bf16.mxu0 0
        %1290 = vmatpush1.bf16.msra.mxu0 0
        %1291 = vmatprep.subr.bf16.mxu0 0
        %1292 = vmatpush1.bf16.msra.mxu0 0
        %1293 = vmatprep.subr.bf16.mxu0 0
        %1294 = vmatpush1.bf16.msra.mxu0 0
        %1295 = vmatprep.mubr.bf16.mxu0 0
        %1296 = vmatmul.mubr.bf16.gmra.mrb[0].mxu0 %v1191
        %v1297 = vpop.f32.mrb[0].mxu0
        %v1298 = vadd.f32 %v1213, %v1297
        %v1299 = vpop.f32.mrb[0].mxu0
        %v1300 = vpop.f32.mrb[0].mxu0
        %v1301 = vpop.f32.mrb[0].mxu0
        %1302 = vdwg.mxu0
        %v1303 = vadd.f32 %v1085, %v1298
        %1304 = vst.msk [vmem:[%s553] sm:$0xff] %vm751, %v1303
        %s1305 = sand.u32 %s415, 1
        %s1306 = scalar_lea.sflag [#allocation6], %s1305
        %s1307 = sand.u32 %s415, 1
        %s1308 = smul.addr %s1307, 8
        %s1309 = scalar_lea.vmem [#allocation5], %s1308
        // Predicated region
        $region107: #{tpu_custom_call.1} parent=87 // pred_check
          %p1310 = pneg %p425
        $region108: #{tpu_custom_call.1} parent=87 // pred_check_branch
          %1312 = sbr.rel (%p1310) target = $region110
        $region109: #{tpu_custom_call.1} parent=87 // pred_region
          %s1314 = ssub.s32 128, 128
          %1315 = vsyncadd %s1306, %s1314
          %s1316 = sadd.s32 %s36, %s35
          %s1317 = smul.addr %s1316, 128
          %s1318 = scalar_lea.hbm %s17, %s1317
          %s1320 = sshll.u32 %s1309, 4
          %s1321 = int_to_ptr.vmem [resolvable:$true] %s1320
          %1323 = dma.vmem_to_hbm [thread:$0]  %s1321, 128, %s1318, %s1306
        $region110: #{tpu_custom_call.1} parent=87 // pred_fallthru
          _
      $region88: #{tpu_custom_call.1} parent=5 // pred_fallthru
        _
      %p1324 = scmp.le.s32.totalorder 2, %s26
      // Predicated region
      $region111: #{tpu_custom_call.1} parent=5 // pred_check
        %p1325 = pneg %p1324
      $region112: #{tpu_custom_call.1} parent=5 // pred_check_branch
        %1327 = sbr.rel (%p1325) target = $region114
      $region113: #{tpu_custom_call.1} parent=5 // pred_region
        %s1328 = ssub.s32 %s26, 2
        // Predicated region
        $region115: #{tpu_custom_call.1} parent=113 // pred_check
          %p1329 = pneg %p431
        $region116: #{tpu_custom_call.1} parent=113 // pred_check_branch
          %1331 = sbr.rel (%p1329) target = $region118
        $region117: #{tpu_custom_call.1} parent=113 // pred_region
          %s1332 = sand.u32 %s416, 1
          %s1333 = scalar_lea.sflag [#allocation6], %s1332
          %s1334 = sand.u32 %s416, 1
          %s1335 = smul.addr %s1334, 8
          %s1336 = scalar_lea.vmem [#allocation5], %s1335
          %1337 = dma.done %s1333, 128
        $region118: #{tpu_custom_call.1} parent=113 // pred_fallthru
          _
      $region114: #{tpu_custom_call.1} parent=5 // pred_fallthru
        _
    $region6: #{tpu_custom_call.1} parent=1 // loop_footer
      %s30 = sadd.s32 1, %s26
    $region7: #{tpu_custom_call.1} parent=1 // loop_footer_branch
      %25 = sbr.rel target = $region3
    $region8: #{tpu_custom_call.1} parent=1 // loop_exit
      _
    %1338 = vsyncpa [#allocation6], 1
    %s1339 = scalar_lea.sflag [#allocation6], 1
    %1340 = vsyncpa %s1339, 1

</llo_original>
